<compile_context>
chip_gen: v5e
topology: v5e:2x2
jax: 0.10.0
libtpu: 0.0.40
codegen_flags: <defaults>
</compile_context>

<pallas_src>
import functools

import numpy as np
import jax
import jax.numpy as jnp
from jax import lax
from jax.experimental import pallas as pl
from jax.experimental.pallas import tpu as pltpu


_VMEM_BUDGET = 40 << 20  # conservative pipelined working-set target (fits v7x's 64 MiB)


def _round_up(x, m):
    return (x + m - 1) // m * m


def _pick_batch_block(n_pad):
    """n_pad is a multiple of 16.  Prefer >=2 blocks (v7x megacore) when n_pad >= 32;
    NBLK is always a multiple of 16 so bf16 Gx blocks are (16,128)-tile aligned."""
    cap = n_pad // 2 if n_pad >= 32 else n_pad
    for blk in (128, 64, 32, 16):
        if blk <= cap and n_pad % blk == 0:
            return blk
    return 16


def _pick_time_chunk(T, NBLK, HP, tc_cap=None):
    """Choose timesteps-per-grid-step from a VMEM budget; return (Tc, n_chunks)."""
    wh_bytes = 2 * (HP * 4 * HP * 4)       # f32 Wh, double-buffered (fetched once: grid-invariant)
    hc_bytes = 2 * 2 * (NBLK * HP * 4)     # f32 h/c carries (double-buffered, conservative)
    per_step = 2 * (NBLK * 4 * HP * 2)     # bf16 Gx slab per timestep, double-buffered
    avail = max(_VMEM_BUDGET - wh_bytes - hc_bytes, per_step)
    tc_max = max(int(avail // per_step), 1)
    if tc_cap is not None:
        tc_max = max(min(tc_max, int(tc_cap)), 1)
    # Balance chunk size vs. tail padding waste: use the minimum number of chunks that
    # keeps Tc <= tc_max, then evenly split T across them.
    n_chunks = -(-T // tc_max)
    Tc = -(-T // n_chunks)
    return Tc, n_chunks


def _sigmoid_via_tanh(x):
    # sigmoid(x) == 0.5 * tanh(0.5 * x) + 0.5 : single EUP op, no exp + reciprocal/divide.
    return 0.5 * jnp.tanh(0.5 * x) + 0.5


def _gate_math(gates, c_prev, HP):
    """gates: (rows, 4*HP) f32, gate column order [i | f | g | o]."""
    i_t = _sigmoid_via_tanh(gates[:, 0 * HP:1 * HP])
    f_t = _sigmoid_via_tanh(gates[:, 1 * HP:2 * HP])
    g_t = jnp.tanh(gates[:, 2 * HP:3 * HP])
    o_t = _sigmoid_via_tanh(gates[:, 3 * HP:4 * HP])
    c_t = f_t * c_prev + i_t * g_t
    h_t = o_t * jnp.tanh(c_t)
    return h_t, c_t


def make_lstm_kernel(Tc, NBLK, HP, T_valid, needs_mask, unroll):
    """One grid step = one (batch block, time chunk).

    gx_ref : (Tc, NBLK, 4*HP) bf16  precomputed x@Wx + b for this time chunk
    wh_ref : (HP, 4*HP)       f32   stacked hidden weights [i|f|g|o] (grid-invariant)
    h_ref  : (NBLK, HP)       f32   hidden state (VMEM-resident carry / output)
    c_ref  : (NBLK, HP)       f32   cell   state (VMEM-resident carry / output)
    """
    sub = NBLK // 2  # two independent recurrence chains per batch block (NBLK % 16 == 0)

    def kernel(gx_ref, wh_ref, h_ref, c_ref):
        @pl.when(pl.program_id(1) == 0)
        def _():
            # Zero-init the carries at the first time chunk of each batch block.
            h_ref[...] = jnp.zeros_like(h_ref)
            c_ref[...] = jnp.zeros_like(c_ref)

        wh = wh_ref[...]                    # (HP, 4*HP) f32, resident weights
        t0 = pl.program_id(1) * Tc          # global step index of this time chunk

        def step(t, carry):
            # Load this timestep's precomputed input projection once, widen to f32.
            gx_t = gx_ref[t].astype(jnp.float32)            # (NBLK, 4*HP)
            if needs_mask:
                valid = (t0 + t) < T_valid                  # scalar: tail-padding mask
            new = []
            # Two independent chains -> the scheduler can overlap chain B's MXU matmul
            # with chain A's sigmoid/tanh gate math (the per-chain recurrence is serial).
            for ch in range(2):
                h_prev = carry[2 * ch]
                c_prev = carry[2 * ch + 1]
                gates = gx_t[ch * sub:(ch + 1) * sub, :] + jnp.dot(
                    h_prev, wh, preferred_element_type=jnp.float32)
                h_t, c_t = _gate_math(gates, c_prev, HP)
                if needs_mask:
                    h_t = jnp.where(valid, h_t, h_prev)
                    c_t = jnp.where(valid, c_t, c_prev)
                new += [h_t, c_t]
            return tuple(new)

        init = (h_ref[pl.ds(0, sub), :], c_ref[pl.ds(0, sub), :],
                h_ref[pl.ds(sub, sub), :], c_ref[pl.ds(sub, sub), :])
        h_a, c_a, h_b, c_b = lax.fori_loop(0, Tc, step, init, unroll=unroll)
        h_ref[pl.ds(0, sub), :] = h_a
        c_ref[pl.ds(0, sub), :] = c_a
        h_ref[pl.ds(sub, sub), :] = h_b
        c_ref[pl.ds(sub, sub), :] = c_b

    return kernel


def lstm_forward(x, params, tc_cap=None):
    """x: (N, T, D) float32. Returns (h_T, c_T), each (N, H).

    Matches the PyTorch module (including the g-gate-uses-whf quirk).
    `tc_cap` optionally caps the time-chunk size (testing / tuning knob).
    """
    N, T, D = x.shape
    H = params["whi"].shape[0]

    HP = _round_up(H, 128)            # lane-aligned gate blocks / unmasked stores
    N_pad = _round_up(N, 16)          # (16,128)-aligned batch for the bf16 Gx blocks
    NBLK = _pick_batch_block(N_pad)   # batch block ("parallel" grid axis)
    Tc, n_chunks = _pick_time_chunk(T, NBLK, HP, tc_cap)
    T_pad = Tc * n_chunks
    unroll = max(1, min(8, Tc))       # bounded unroll: LLO visibility without code bloat

    f32, bf16 = jnp.float32, jnp.bfloat16

    # --- per-gate zero padding so padded hidden lanes stay exactly zero through the recurrence ---
    def pad_cols(w):   # (D, H)  -> (D, HP)
        return jnp.pad(w, ((0, 0), (0, HP - H)))

    def pad_hh(w):     # (H, H)  -> (HP, HP)   (zero rows kill padded-lane feedback)
        return jnp.pad(w, ((0, HP - H), (0, HP - H)))

    def pad_b(bv):     # (H,)    -> (HP,)
        return jnp.pad(bv, (0, HP - H))

    # Stacked input-projection weights / bias, gate column order [i, f, g, o].
    wx = jnp.concatenate([pad_cols(params["wii"]), pad_cols(params["wif"]),
                          pad_cols(params["wig"]), pad_cols(params["wio"])], axis=1)   # (D, 4HP)
    b = jnp.concatenate([pad_b(params["bii"] + params["bhi"]),
                         pad_b(params["bif"] + params["bhf"]),
                         pad_b(params["big"] + params["bhg"]),
                         pad_b(params["bio"] + params["bho"])], axis=0)                # (4HP,)
    # Hidden-projection weights. NOTE: g gate uses whf (module quirk), matching the spec.
    # Kept in f32: MXU/interpret-safe dot and no per-step h quantization drift.
    wh = jnp.concatenate([pad_hh(params["whi"]), pad_hh(params["whf"]),
                          pad_hh(params["whf"]), pad_hh(params["who"])], axis=1)       # (HP, 4HP) f32

    # Hoisted input projection for ALL timesteps: one big f32 matmul done by XLA,
    # produced time-major; result is cast to bf16 purely for streaming (halves HBM traffic
    # and the per-chunk VMEM tile) and widened back to f32 inside the kernel.
    gx = jnp.einsum("ntd,dg->tng", x, wx) + b                                          # (T, N, 4HP) f32
    gx = gx.astype(bf16)
    gx = jnp.pad(gx, ((0, T_pad - T), (0, N_pad - N), (0, 0)))                         # (T_pad, N_pad, 4HP)

    grid = (N_pad // NBLK, n_chunks)

    # Explicit VMEM limit: actual pipelined working set + headroom, clamped to sane bounds.
    gx_block_bytes = Tc * NBLK * 4 * HP * 2
    need = 2 * gx_block_bytes + 2 * (HP * 4 * HP * 4) + 2 * 2 * (NBLK * HP * 4)
    vmem_limit = int(min(max(need + (8 << 20), 32 << 20), 100 << 20))

    kernel = make_lstm_kernel(Tc, NBLK, HP, T, T_pad != T, unroll)

    h_pad, c_pad = pl.pallas_call(
        kernel,
        out_shape=(jax.ShapeDtypeStruct((N_pad, HP), f32),
                   jax.ShapeDtypeStruct((N_pad, HP), f32)),
        grid_spec=pltpu.PrefetchScalarGridSpec(
            num_scalar_prefetch=0,
            grid=grid,
            in_specs=[
                # Gx time chunk for this (batch block, time chunk), streamed in bf16.
                pl.BlockSpec((Tc, NBLK, 4 * HP), lambda nb, c: (c, nb, 0)),
                # Wh resident across the whole grid (same block index every step ->
                # fetched once; footprint accounted for in the Tc VMEM budget).
                pl.BlockSpec((HP, 4 * HP), lambda nb, c: (0, 0)),
            ],
            out_specs=[
                # Same block index across the time axis -> VMEM-resident carries.
                pl.BlockSpec((NBLK, HP), lambda nb, c: (nb, 0)),
                pl.BlockSpec((NBLK, HP), lambda nb, c: (nb, 0)),
            ],
        ),
        compiler_params=pltpu.CompilerParams(
            dimension_semantics=("parallel", "arbitrary"),
            vmem_limit_bytes=vmem_limit),
    )(gx, wh)

    return h_pad[:N, :H], c_pad[:N, :H]


def init_params(key, input_size, hidden_size):
    """Deterministic init matching the module: xavier_uniform for matrices, zeros for biases."""
    def xavier(k, shape):
        fan_in, fan_out = shape
        bound = float(np.sqrt(6.0 / (fan_in + fan_out)))
        return jax.random.uniform(k, shape, jnp.float32, -bound, bound)

    names = ["wii", "whi", "wif", "whf", "wig", "whg", "wio", "who"]
    keys = jax.random.split(key, len(names))
    params = {}
    for name, k in zip(names, keys):
        shape = ((input_size, hidden_size) if name[1] == "i"
                 else (hidden_size, hidden_size))
        params[name] = xavier(k, shape)
    for bname in ["bii", "bhi", "bif", "bhf", "big", "bhg", "bio", "bho"]:
        params[bname] = jnp.zeros((hidden_size,), jnp.float32)
    return params


def lstm_forward_ref(x, params):
    """Pure-JAX f32 reference mirroring the PyTorch loop (including the whf quirk)."""
    N, T, D = x.shape
    H = params["whi"].shape[0]
    h_t = jnp.zeros((N, H), jnp.float32)
    c_t = jnp.zeros((N, H), jnp.float32)
    for t in range(T):
        x_t = x[:, t, :]
        i_t = jax.nn.sigmoid(x_t @ params["wii"] + params["bii"] + h_t @ params["whi"] + params["bhi"])
        f_t = jax.nn.sigmoid(x_t @ params["wif"] + params["bif"] + h_t @ params["whf"] + params["bhf"])
        g_t = jnp.tanh(x_t @ params["wig"] + params["big"] + h_t @ params["whf"] + params["bhg"])
        o_t = jax.nn.sigmoid(x_t @ params["wio"] + params["bio"] + h_t @ params["who"] + params["bho"])
        c_t = f_t * c_t + i_t * g_t
        h_t = o_t * jnp.tanh(c_t)
    return h_t, c_t


if __name__ == "__main__":
    key = jax.random.PRNGKey(0)
    kx, kp, kx2, kp2 = jax.random.split(key, 4)

    # --- Test 1: small shapes consistent with the module (batch=2, seq=8, D=16, H=32). ---
    N, T, D, H = 2, 8, 16, 32
    x = jax.random.normal(kx, (N, T, D), jnp.float32)
    params = init_params(kp, D, H)

    h_out, c_out = jax.jit(lstm_forward)(x, params)
    jax.block_until_ready((h_out, c_out))
    h_ref, c_ref = lstm_forward_ref(x, params)
    # Tolerance accounts for bf16 streaming of the precomputed gate inputs (all math is f32).
    np.testing.assert_allclose(np.asarray(h_out), np.asarray(h_ref), atol=2e-2, rtol=2e-2)
    np.testing.assert_allclose(np.asarray(c_out), np.asarray(c_ref), atol=2e-2, rtol=2e-2)

    # --- Test 2: exercises batch padding (19->32), 2 batch blocks, 3 time chunks and the
    #     ragged-tail mask (T=13 with a forced time-chunk cap of 5). ---
    N2, T2, D2, H2 = 19, 13, 24, 48
    x2 = jax.random.normal(kx2, (N2, T2, D2), jnp.float32)
    params2 = init_params(kp2, D2, H2)
    fwd2 = jax.jit(functools.partial(lstm_forward, tc_cap=5))
    h2, c2 = fwd2(x2, params2)
    jax.block_until_ready((h2, c2))
    h2_ref, c2_ref = lstm_forward_ref(x2, params2)
    np.testing.assert_allclose(np.asarray(h2), np.asarray(h2_ref), atol=2e-2, rtol=2e-2)
    np.testing.assert_allclose(np.asarray(c2), np.asarray(c2_ref), atol=2e-2, rtol=2e-2)

    print("KERNEL_OK")
</pallas_src>

<mosaic_0001>
module attributes {stable_mosaic.version = 11 : i64} {
  func.func @kernel(%arg0: i32, %arg1: i32, %arg2: memref<8x16x512xbf16, #tpu.memory_space<vmem>>, %arg3: memref<128x512xf32, #tpu.memory_space<vmem>>, %arg4: memref<16x128xf32, #tpu.memory_space<vmem>>, %arg5: memref<16x128xf32, #tpu.memory_space<vmem>>) attributes {dimension_semantics = [#tpu.dimension_semantics<parallel>, #tpu.dimension_semantics<arbitrary>], iteration_bounds = array<i64: 1, 1>, scalar_prefetch = 0 : i64, scratch_operands = 0 : i64, tpu.core_type = #tpu.core_type<tc>, window_params = [{transform_indices = @transform_0, window_bounds = array<i64: 8, 16, 512>}, {pipeline_mode = #tpu.pipeline_mode<synchronous>, transform_indices = @transform_1, window_bounds = array<i64: 128, 512>}, {transform_indices = @transform_2, window_bounds = array<i64: 16, 128>}, {transform_indices = @transform_3, window_bounds = array<i64: 16, 128>}]} {
    %c0_i32 = arith.constant 0 : i32
    %0 = arith.cmpi eq, %arg1, %c0_i32 : i32
    %1 = arith.extui %0 : i1 to i32
    %c0_i32_0 = arith.constant 0 : i32
    %2 = arith.cmpi ne, %1, %c0_i32_0 : i32
    scf.if %2 {
      %cst_193 = arith.constant 0.000000e+00 : f32
      %588 = vector.broadcast %cst_193 : f32 to vector<16x128xf32>
      %c0_194 = arith.constant 0 : index
      %c0_195 = arith.constant 0 : index
      %589 = vector.load %arg4[%c0_194, %c0_195] : memref<16x128xf32, #tpu.memory_space<vmem>>, vector<16x128xf32>
      tpu.vector_store %arg4[%c0_194, %c0_195], %588 {strides = array<i32>} : memref<16x128xf32, #tpu.memory_space<vmem>>, vector<16x128xf32>,
      %cst_196 = arith.constant 0.000000e+00 : f32
      %590 = vector.broadcast %cst_196 : f32 to vector<16x128xf32>
      %c0_197 = arith.constant 0 : index
      %c0_198 = arith.constant 0 : index
      %591 = vector.load %arg5[%c0_197, %c0_198] : memref<16x128xf32, #tpu.memory_space<vmem>>, vector<16x128xf32>
      tpu.vector_store %arg5[%c0_197, %c0_198], %590 {strides = array<i32>} : memref<16x128xf32, #tpu.memory_space<vmem>>, vector<16x128xf32>,
    } else {
    }
    %c0 = arith.constant 0 : index
    %c0_1 = arith.constant 0 : index
    %3 = vector.load %arg3[%c0, %c0_1] : memref<128x512xf32, #tpu.memory_space<vmem>>, vector<128x512xf32>
    %c0_2 = arith.constant 0 : index
    %c0_3 = arith.constant 0 : index
    %4 = vector.load %arg4[%c0_2, %c0_3] : memref<16x128xf32, #tpu.memory_space<vmem>>, vector<8x128xf32>
    %c0_4 = arith.constant 0 : index
    %c0_5 = arith.constant 0 : index
    %5 = vector.load %arg5[%c0_4, %c0_5] : memref<16x128xf32, #tpu.memory_space<vmem>>, vector<8x128xf32>
    %c8 = arith.constant 8 : index
    %c0_6 = arith.constant 0 : index
    %6 = vector.load %arg4[%c8, %c0_6] : memref<16x128xf32, #tpu.memory_space<vmem>>, vector<8x128xf32>
    %c8_7 = arith.constant 8 : index
    %c0_8 = arith.constant 0 : index
    %7 = vector.load %arg5[%c8_7, %c0_8] : memref<16x128xf32, #tpu.memory_space<vmem>>, vector<8x128xf32>
    %c0_i32_9 = arith.constant 0 : i32
    %8 = arith.index_cast %c0_i32_9 : i32 to index
    %c0_10 = arith.constant 0 : index
    %c0_11 = arith.constant 0 : index
    %9 = vector.load %arg2[%8, %c0_10, %c0_11] : memref<8x16x512xbf16, #tpu.memory_space<vmem>>, vector<1x16x512xbf16>
    %10 = vector.shape_cast %9 : vector<1x16x512xbf16> to vector<16x512xbf16>
    %11 = arith.extf %10 : vector<16x512xbf16> to vector<16x512xf32>
    %12 = vector.extract_strided_slice %11 {offsets = [0, 0], sizes = [8, 512], strides = [1, 1]} : vector<16x512xf32> to vector<8x512xf32>
    %cst = arith.constant dense<0.000000e+00> : vector<8x512xf32>
    %13 = tpu.matmul %4, %3, %cst {dimension_numbers = #tpu.dot_dimension_numbers<[1], [0], [0], [1], [0, 0, 1, 1], [], []>} : vector<8x128xf32>, vector<128x512xf32>, vector<8x512xf32> -> vector<8x512xf32>
    %14 = arith.addf %12, %13 : vector<8x512xf32>
    %15 = vector.extract_strided_slice %14 {offsets = [0, 0], sizes = [8, 128], strides = [1, 1]} : vector<8x512xf32> to vector<8x128xf32>
    %cst_12 = arith.constant 5.000000e-01 : f32
    %16 = vector.broadcast %cst_12 : f32 to vector<8x128xf32>
    %17 = arith.mulf %16, %15 : vector<8x128xf32>
    %18 = math.tanh %17 : vector<8x128xf32>
    %cst_13 = arith.constant 5.000000e-01 : f32
    %19 = vector.broadcast %cst_13 : f32 to vector<8x128xf32>
    %20 = arith.mulf %19, %18 : vector<8x128xf32>
    %cst_14 = arith.constant 5.000000e-01 : f32
    %21 = vector.broadcast %cst_14 : f32 to vector<8x128xf32>
    %22 = arith.addf %20, %21 : vector<8x128xf32>
    %23 = vector.extract_strided_slice %14 {offsets = [0, 128], sizes = [8, 128], strides = [1, 1]} : vector<8x512xf32> to vector<8x128xf32>
    %cst_15 = arith.constant 5.000000e-01 : f32
    %24 = vector.broadcast %cst_15 : f32 to vector<8x128xf32>
    %25 = arith.mulf %24, %23 : vector<8x128xf32>
    %26 = math.tanh %25 : vector<8x128xf32>
    %cst_16 = arith.constant 5.000000e-01 : f32
    %27 = vector.broadcast %cst_16 : f32 to vector<8x128xf32>
    %28 = arith.mulf %27, %26 : vector<8x128xf32>
    %cst_17 = arith.constant 5.000000e-01 : f32
    %29 = vector.broadcast %cst_17 : f32 to vector<8x128xf32>
    %30 = arith.addf %28, %29 : vector<8x128xf32>
    %31 = vector.extract_strided_slice %14 {offsets = [0, 256], sizes = [8, 128], strides = [1, 1]} : vector<8x512xf32> to vector<8x128xf32>
    %32 = math.tanh %31 : vector<8x128xf32>
    %33 = vector.extract_strided_slice %14 {offsets = [0, 384], sizes = [8, 128], strides = [1, 1]} : vector<8x512xf32> to vector<8x128xf32>
    %cst_18 = arith.constant 5.000000e-01 : f32
    %34 = vector.broadcast %cst_18 : f32 to vector<8x128xf32>
    %35 = arith.mulf %34, %33 : vector<8x128xf32>
    %36 = math.tanh %35 : vector<8x128xf32>
    %cst_19 = arith.constant 5.000000e-01 : f32
    %37 = vector.broadcast %cst_19 : f32 to vector<8x128xf32>
    %38 = arith.mulf %37, %36 : vector<8x128xf32>
    %cst_20 = arith.constant 5.000000e-01 : f32
    %39 = vector.broadcast %cst_20 : f32 to vector<8x128xf32>
    %40 = arith.addf %38, %39 : vector<8x128xf32>
    %41 = arith.mulf %30, %5 : vector<8x128xf32>
    %42 = arith.mulf %22, %32 : vector<8x128xf32>
    %43 = arith.addf %41, %42 : vector<8x128xf32>
    %44 = math.tanh %43 : vector<8x128xf32>
    %45 = arith.mulf %40, %44 : vector<8x128xf32>
    %46 = vector.extract_strided_slice %11 {offsets = [8, 0], sizes = [8, 512], strides = [1, 1]} : vector<16x512xf32> to vector<8x512xf32>
    %cst_21 = arith.constant dense<0.000000e+00> : vector<8x512xf32>
    %47 = tpu.matmul %6, %3, %cst_21 {dimension_numbers = #tpu.dot_dimension_numbers<[1], [0], [0], [1], [0, 0, 1, 1], [], []>} : vector<8x128xf32>, vector<128x512xf32>, vector<8x512xf32> -> vector<8x512xf32>
    %48 = arith.addf %46, %47 : vector<8x512xf32>
    %49 = vector.extract_strided_slice %48 {offsets = [0, 0], sizes = [8, 128], strides = [1, 1]} : vector<8x512xf32> to vector<8x128xf32>
    %cst_22 = arith.constant 5.000000e-01 : f32
    %50 = vector.broadcast %cst_22 : f32 to vector<8x128xf32>
    %51 = arith.mulf %50, %49 : vector<8x128xf32>
    %52 = math.tanh %51 : vector<8x128xf32>
    %cst_23 = arith.constant 5.000000e-01 : f32
    %53 = vector.broadcast %cst_23 : f32 to vector<8x128xf32>
    %54 = arith.mulf %53, %52 : vector<8x128xf32>
    %cst_24 = arith.constant 5.000000e-01 : f32
    %55 = vector.broadcast %cst_24 : f32 to vector<8x128xf32>
    %56 = arith.addf %54, %55 : vector<8x128xf32>
    %57 = vector.extract_strided_slice %48 {offsets = [0, 128], sizes = [8, 128], strides = [1, 1]} : vector<8x512xf32> to vector<8x128xf32>
    %cst_25 = arith.constant 5.000000e-01 : f32
    %58 = vector.broadcast %cst_25 : f32 to vector<8x128xf32>
    %59 = arith.mulf %58, %57 : vector<8x128xf32>
    %60 = math.tanh %59 : vector<8x128xf32>
    %cst_26 = arith.constant 5.000000e-01 : f32
    %61 = vector.broadcast %cst_26 : f32 to vector<8x128xf32>
    %62 = arith.mulf %61, %60 : vector<8x128xf32>
    %cst_27 = arith.constant 5.000000e-01 : f32
    %63 = vector.broadcast %cst_27 : f32 to vector<8x128xf32>
    %64 = arith.addf %62, %63 : vector<8x128xf32>
    %65 = vector.extract_strided_slice %48 {offsets = [0, 256], sizes = [8, 128], strides = [1, 1]} : vector<8x512xf32> to vector<8x128xf32>
    %66 = math.tanh %65 : vector<8x128xf32>
    %67 = vector.extract_strided_slice %48 {offsets = [0, 384], sizes = [8, 128], strides = [1, 1]} : vector<8x512xf32> to vector<8x128xf32>
    %cst_28 = arith.constant 5.000000e-01 : f32
    %68 = vector.broadcast %cst_28 : f32 to vector<8x128xf32>
    %69 = arith.mulf %68, %67 : vector<8x128xf32>
    %70 = math.tanh %69 : vector<8x128xf32>
    %cst_29 = arith.constant 5.000000e-01 : f32
    %71 = vector.broadcast %cst_29 : f32 to vector<8x128xf32>
    %72 = arith.mulf %71, %70 : vector<8x128xf32>
    %cst_30 = arith.constant 5.000000e-01 : f32
    %73 = vector.broadcast %cst_30 : f32 to vector<8x128xf32>
    %74 = arith.addf %72, %73 : vector<8x128xf32>
    %75 = arith.mulf %64, %7 : vector<8x128xf32>
    %76 = arith.mulf %56, %66 : vector<8x128xf32>
    %77 = arith.addf %75, %76 : vector<8x128xf32>
    %78 = math.tanh %77 : vector<8x128xf32>
    %79 = arith.mulf %74, %78 : vector<8x128xf32>
    %c1_i32 = arith.constant 1 : i32
    %80 = arith.index_cast %c1_i32 : i32 to index
    %c0_31 = arith.constant 0 : index
    %c0_32 = arith.constant 0 : index
    %81 = vector.load %arg2[%80, %c0_31, %c0_32] : memref<8x16x512xbf16, #tpu.memory_space<vmem>>, vector<1x16x512xbf16>
    %82 = vector.shape_cast %81 : vector<1x16x512xbf16> to vector<16x512xbf16>
    %83 = arith.extf %82 : vector<16x512xbf16> to vector<16x512xf32>
    %84 = vector.extract_strided_slice %83 {offsets = [0, 0], sizes = [8, 512], strides = [1, 1]} : vector<16x512xf32> to vector<8x512xf32>
    %cst_33 = arith.constant dense<0.000000e+00> : vector<8x512xf32>
    %85 = tpu.matmul %45, %3, %cst_33 {dimension_numbers = #tpu.dot_dimension_numbers<[1], [0], [0], [1], [0, 0, 1, 1], [], []>} : vector<8x128xf32>, vector<128x512xf32>, vector<8x512xf32> -> vector<8x512xf32>
    %86 = arith.addf %84, %85 : vector<8x512xf32>
    %87 = vector.extract_strided_slice %86 {offsets = [0, 0], sizes = [8, 128], strides = [1, 1]} : vector<8x512xf32> to vector<8x128xf32>
    %cst_34 = arith.constant 5.000000e-01 : f32
    %88 = vector.broadcast %cst_34 : f32 to vector<8x128xf32>
    %89 = arith.mulf %88, %87 : vector<8x128xf32>
    %90 = math.tanh %89 : vector<8x128xf32>
    %cst_35 = arith.constant 5.000000e-01 : f32
    %91 = vector.broadcast %cst_35 : f32 to vector<8x128xf32>
    %92 = arith.mulf %91, %90 : vector<8x128xf32>
    %cst_36 = arith.constant 5.000000e-01 : f32
    %93 = vector.broadcast %cst_36 : f32 to vector<8x128xf32>
    %94 = arith.addf %92, %93 : vector<8x128xf32>
    %95 = vector.extract_strided_slice %86 {offsets = [0, 128], sizes = [8, 128], strides = [1, 1]} : vector<8x512xf32> to vector<8x128xf32>
    %cst_37 = arith.constant 5.000000e-01 : f32
    %96 = vector.broadcast %cst_37 : f32 to vector<8x128xf32>
    %97 = arith.mulf %96, %95 : vector<8x128xf32>
    %98 = math.tanh %97 : vector<8x128xf32>
    %cst_38 = arith.constant 5.000000e-01 : f32
    %99 = vector.broadcast %cst_38 : f32 to vector<8x128xf32>
    %100 = arith.mulf %99, %98 : vector<8x128xf32>
    %cst_39 = arith.constant 5.000000e-01 : f32
    %101 = vector.broadcast %cst_39 : f32 to vector<8x128xf32>
    %102 = arith.addf %100, %101 : vector<8x128xf32>
    %103 = vector.extract_strided_slice %86 {offsets = [0, 256], sizes = [8, 128], strides = [1, 1]} : vector<8x512xf32> to vector<8x128xf32>
    %104 = math.tanh %103 : vector<8x128xf32>
    %105 = vector.extract_strided_slice %86 {offsets = [0, 384], sizes = [8, 128], strides = [1, 1]} : vector<8x512xf32> to vector<8x128xf32>
    %cst_40 = arith.constant 5.000000e-01 : f32
    %106 = vector.broadcast %cst_40 : f32 to vector<8x128xf32>
    %107 = arith.mulf %106, %105 : vector<8x128xf32>
    %108 = math.tanh %107 : vector<8x128xf32>
    %cst_41 = arith.constant 5.000000e-01 : f32
    %109 = vector.broadcast %cst_41 : f32 to vector<8x128xf32>
    %110 = arith.mulf %109, %108 : vector<8x128xf32>
    %cst_42 = arith.constant 5.000000e-01 : f32
    %111 = vector.broadcast %cst_42 : f32 to vector<8x128xf32>
    %112 = arith.addf %110, %111 : vector<8x128xf32>
    %113 = arith.mulf %102, %43 : vector<8x128xf32>
    %114 = arith.mulf %94, %104 : vector<8x128xf32>
    %115 = arith.addf %113, %114 : vector<8x128xf32>
    %116 = math.tanh %115 : vector<8x128xf32>
    %117 = arith.mulf %112, %116 : vector<8x128xf32>
    %118 = vector.extract_strided_slice %83 {offsets = [8, 0], sizes = [8, 512], strides = [1, 1]} : vector<16x512xf32> to vector<8x512xf32>
    %cst_43 = arith.constant dense<0.000000e+00> : vector<8x512xf32>
    %119 = tpu.matmul %79, %3, %cst_43 {dimension_numbers = #tpu.dot_dimension_numbers<[1], [0], [0], [1], [0, 0, 1, 1], [], []>} : vector<8x128xf32>, vector<128x512xf32>, vector<8x512xf32> -> vector<8x512xf32>
    %120 = arith.addf %118, %119 : vector<8x512xf32>
    %121 = vector.extract_strided_slice %120 {offsets = [0, 0], sizes = [8, 128], strides = [1, 1]} : vector<8x512xf32> to vector<8x128xf32>
    %cst_44 = arith.constant 5.000000e-01 : f32
    %122 = vector.broadcast %cst_44 : f32 to vector<8x128xf32>
    %123 = arith.mulf %122, %121 : vector<8x128xf32>
    %124 = math.tanh %123 : vector<8x128xf32>
    %cst_45 = arith.constant 5.000000e-01 : f32
    %125 = vector.broadcast %cst_45 : f32 to vector<8x128xf32>
    %126 = arith.mulf %125, %124 : vector<8x128xf32>
    %cst_46 = arith.constant 5.000000e-01 : f32
    %127 = vector.broadcast %cst_46 : f32 to vector<8x128xf32>
    %128 = arith.addf %126, %127 : vector<8x128xf32>
    %129 = vector.extract_strided_slice %120 {offsets = [0, 128], sizes = [8, 128], strides = [1, 1]} : vector<8x512xf32> to vector<8x128xf32>
    %cst_47 = arith.constant 5.000000e-01 : f32
    %130 = vector.broadcast %cst_47 : f32 to vector<8x128xf32>
    %131 = arith.mulf %130, %129 : vector<8x128xf32>
    %132 = math.tanh %131 : vector<8x128xf32>
    %cst_48 = arith.constant 5.000000e-01 : f32
    %133 = vector.broadcast %cst_48 : f32 to vector<8x128xf32>
    %134 = arith.mulf %133, %132 : vector<8x128xf32>
    %cst_49 = arith.constant 5.000000e-01 : f32
    %135 = vector.broadcast %cst_49 : f32 to vector<8x128xf32>
    %136 = arith.addf %134, %135 : vector<8x128xf32>
    %137 = vector.extract_strided_slice %120 {offsets = [0, 256], sizes = [8, 128], strides = [1, 1]} : vector<8x512xf32> to vector<8x128xf32>
    %138 = math.tanh %137 : vector<8x128xf32>
    %139 = vector.extract_strided_slice %120 {offsets = [0, 384], sizes = [8, 128], strides = [1, 1]} : vector<8x512xf32> to vector<8x128xf32>
    %cst_50 = arith.constant 5.000000e-01 : f32
    %140 = vector.broadcast %cst_50 : f32 to vector<8x128xf32>
    %141 = arith.mulf %140, %139 : vector<8x128xf32>
    %142 = math.tanh %141 : vector<8x128xf32>
    %cst_51 = arith.constant 5.000000e-01 : f32
    %143 = vector.broadcast %cst_51 : f32 to vector<8x128xf32>
    %144 = arith.mulf %143, %142 : vector<8x128xf32>
    %cst_52 = arith.constant 5.000000e-01 : f32
    %145 = vector.broadcast %cst_52 : f32 to vector<8x128xf32>
    %146 = arith.addf %144, %145 : vector<8x128xf32>
    %147 = arith.mulf %136, %77 : vector<8x128xf32>
    %148 = arith.mulf %128, %138 : vector<8x128xf32>
    %149 = arith.addf %147, %148 : vector<8x128xf32>
    %150 = math.tanh %149 : vector<8x128xf32>
    %151 = arith.mulf %146, %150 : vector<8x128xf32>
    %c2_i32 = arith.constant 2 : i32
    %152 = arith.index_cast %c2_i32 : i32 to index
    %c0_53 = arith.constant 0 : index
    %c0_54 = arith.constant 0 : index
    %153 = vector.load %arg2[%152, %c0_53, %c0_54] : memref<8x16x512xbf16, #tpu.memory_space<vmem>>, vector<1x16x512xbf16>
    %154 = vector.shape_cast %153 : vector<1x16x512xbf16> to vector<16x512xbf16>
    %155 = arith.extf %154 : vector<16x512xbf16> to vector<16x512xf32>
    %156 = vector.extract_strided_slice %155 {offsets = [0, 0], sizes = [8, 512], strides = [1, 1]} : vector<16x512xf32> to vector<8x512xf32>
    %cst_55 = arith.constant dense<0.000000e+00> : vector<8x512xf32>
    %157 = tpu.matmul %117, %3, %cst_55 {dimension_numbers = #tpu.dot_dimension_numbers<[1], [0], [0], [1], [0, 0, 1, 1], [], []>} : vector<8x128xf32>, vector<128x512xf32>, vector<8x512xf32> -> vector<8x512xf32>
    %158 = arith.addf %156, %157 : vector<8x512xf32>
    %159 = vector.extract_strided_slice %158 {offsets = [0, 0], sizes = [8, 128], strides = [1, 1]} : vector<8x512xf32> to vector<8x128xf32>
    %cst_56 = arith.constant 5.000000e-01 : f32
    %160 = vector.broadcast %cst_56 : f32 to vector<8x128xf32>
    %161 = arith.mulf %160, %159 : vector<8x128xf32>
    %162 = math.tanh %161 : vector<8x128xf32>
    %cst_57 = arith.constant 5.000000e-01 : f32
    %163 = vector.broadcast %cst_57 : f32 to vector<8x128xf32>
    %164 = arith.mulf %163, %162 : vector<8x128xf32>
    %cst_58 = arith.constant 5.000000e-01 : f32
    %165 = vector.broadcast %cst_58 : f32 to vector<8x128xf32>
    %166 = arith.addf %164, %165 : vector<8x128xf32>
    %167 = vector.extract_strided_slice %158 {offsets = [0, 128], sizes = [8, 128], strides = [1, 1]} : vector<8x512xf32> to vector<8x128xf32>
    %cst_59 = arith.constant 5.000000e-01 : f32
    %168 = vector.broadcast %cst_59 : f32 to vector<8x128xf32>
    %169 = arith.mulf %168, %167 : vector<8x128xf32>
    %170 = math.tanh %169 : vector<8x128xf32>
    %cst_60 = arith.constant 5.000000e-01 : f32
    %171 = vector.broadcast %cst_60 : f32 to vector<8x128xf32>
    %172 = arith.mulf %171, %170 : vector<8x128xf32>
    %cst_61 = arith.constant 5.000000e-01 : f32
    %173 = vector.broadcast %cst_61 : f32 to vector<8x128xf32>
    %174 = arith.addf %172, %173 : vector<8x128xf32>
    %175 = vector.extract_strided_slice %158 {offsets = [0, 256], sizes = [8, 128], strides = [1, 1]} : vector<8x512xf32> to vector<8x128xf32>
    %176 = math.tanh %175 : vector<8x128xf32>
    %177 = vector.extract_strided_slice %158 {offsets = [0, 384], sizes = [8, 128], strides = [1, 1]} : vector<8x512xf32> to vector<8x128xf32>
    %cst_62 = arith.constant 5.000000e-01 : f32
    %178 = vector.broadcast %cst_62 : f32 to vector<8x128xf32>
    %179 = arith.mulf %178, %177 : vector<8x128xf32>
    %180 = math.tanh %179 : vector<8x128xf32>
    %cst_63 = arith.constant 5.000000e-01 : f32
    %181 = vector.broadcast %cst_63 : f32 to vector<8x128xf32>
    %182 = arith.mulf %181, %180 : vector<8x128xf32>
    %cst_64 = arith.constant 5.000000e-01 : f32
    %183 = vector.broadcast %cst_64 : f32 to vector<8x128xf32>
    %184 = arith.addf %182, %183 : vector<8x128xf32>
    %185 = arith.mulf %174, %115 : vector<8x128xf32>
    %186 = arith.mulf %166, %176 : vector<8x128xf32>
    %187 = arith.addf %185, %186 : vector<8x128xf32>
    %188 = math.tanh %187 : vector<8x128xf32>
    %189 = arith.mulf %184, %188 : vector<8x128xf32>
    %190 = vector.extract_strided_slice %155 {offsets = [8, 0], sizes = [8, 512], strides = [1, 1]} : vector<16x512xf32> to vector<8x512xf32>
    %cst_65 = arith.constant dense<0.000000e+00> : vector<8x512xf32>
    %191 = tpu.matmul %151, %3, %cst_65 {dimension_numbers = #tpu.dot_dimension_numbers<[1], [0], [0], [1], [0, 0, 1, 1], [], []>} : vector<8x128xf32>, vector<128x512xf32>, vector<8x512xf32> -> vector<8x512xf32>
    %192 = arith.addf %190, %191 : vector<8x512xf32>
    %193 = vector.extract_strided_slice %192 {offsets = [0, 0], sizes = [8, 128], strides = [1, 1]} : vector<8x512xf32> to vector<8x128xf32>
    %cst_66 = arith.constant 5.000000e-01 : f32
    %194 = vector.broadcast %cst_66 : f32 to vector<8x128xf32>
    %195 = arith.mulf %194, %193 : vector<8x128xf32>
    %196 = math.tanh %195 : vector<8x128xf32>
    %cst_67 = arith.constant 5.000000e-01 : f32
    %197 = vector.broadcast %cst_67 : f32 to vector<8x128xf32>
    %198 = arith.mulf %197, %196 : vector<8x128xf32>
    %cst_68 = arith.constant 5.000000e-01 : f32
    %199 = vector.broadcast %cst_68 : f32 to vector<8x128xf32>
    %200 = arith.addf %198, %199 : vector<8x128xf32>
    %201 = vector.extract_strided_slice %192 {offsets = [0, 128], sizes = [8, 128], strides = [1, 1]} : vector<8x512xf32> to vector<8x128xf32>
    %cst_69 = arith.constant 5.000000e-01 : f32
    %202 = vector.broadcast %cst_69 : f32 to vector<8x128xf32>
    %203 = arith.mulf %202, %201 : vector<8x128xf32>
    %204 = math.tanh %203 : vector<8x128xf32>
    %cst_70 = arith.constant 5.000000e-01 : f32
    %205 = vector.broadcast %cst_70 : f32 to vector<8x128xf32>
    %206 = arith.mulf %205, %204 : vector<8x128xf32>
    %cst_71 = arith.constant 5.000000e-01 : f32
    %207 = vector.broadcast %cst_71 : f32 to vector<8x128xf32>
    %208 = arith.addf %206, %207 : vector<8x128xf32>
    %209 = vector.extract_strided_slice %192 {offsets = [0, 256], sizes = [8, 128], strides = [1, 1]} : vector<8x512xf32> to vector<8x128xf32>
    %210 = math.tanh %209 : vector<8x128xf32>
    %211 = vector.extract_strided_slice %192 {offsets = [0, 384], sizes = [8, 128], strides = [1, 1]} : vector<8x512xf32> to vector<8x128xf32>
    %cst_72 = arith.constant 5.000000e-01 : f32
    %212 = vector.broadcast %cst_72 : f32 to vector<8x128xf32>
    %213 = arith.mulf %212, %211 : vector<8x128xf32>
    %214 = math.tanh %213 : vector<8x128xf32>
    %cst_73 = arith.constant 5.000000e-01 : f32
    %215 = vector.broadcast %cst_73 : f32 to vector<8x128xf32>
    %216 = arith.mulf %215, %214 : vector<8x128xf32>
    %cst_74 = arith.constant 5.000000e-01 : f32
    %217 = vector.broadcast %cst_74 : f32 to vector<8x128xf32>
    %218 = arith.addf %216, %217 : vector<8x128xf32>
    %219 = arith.mulf %208, %149 : vector<8x128xf32>
    %220 = arith.mulf %200, %210 : vector<8x128xf32>
    %221 = arith.addf %219, %220 : vector<8x128xf32>
    %222 = math.tanh %221 : vector<8x128xf32>
    %223 = arith.mulf %218, %222 : vector<8x128xf32>
    %c3_i32 = arith.constant 3 : i32
    %224 = arith.index_cast %c3_i32 : i32 to index
    %c0_75 = arith.constant 0 : index
    %c0_76 = arith.constant 0 : index
    %225 = vector.load %arg2[%224, %c0_75, %c0_76] : memref<8x16x512xbf16, #tpu.memory_space<vmem>>, vector<1x16x512xbf16>
    %226 = vector.shape_cast %225 : vector<1x16x512xbf16> to vector<16x512xbf16>
    %227 = arith.extf %226 : vector<16x512xbf16> to vector<16x512xf32>
    %228 = vector.extract_strided_slice %227 {offsets = [0, 0], sizes = [8, 512], strides = [1, 1]} : vector<16x512xf32> to vector<8x512xf32>
    %cst_77 = arith.constant dense<0.000000e+00> : vector<8x512xf32>
    %229 = tpu.matmul %189, %3, %cst_77 {dimension_numbers = #tpu.dot_dimension_numbers<[1], [0], [0], [1], [0, 0, 1, 1], [], []>} : vector<8x128xf32>, vector<128x512xf32>, vector<8x512xf32> -> vector<8x512xf32>
    %230 = arith.addf %228, %229 : vector<8x512xf32>
    %231 = vector.extract_strided_slice %230 {offsets = [0, 0], sizes = [8, 128], strides = [1, 1]} : vector<8x512xf32> to vector<8x128xf32>
    %cst_78 = arith.constant 5.000000e-01 : f32
    %232 = vector.broadcast %cst_78 : f32 to vector<8x128xf32>
    %233 = arith.mulf %232, %231 : vector<8x128xf32>
    %234 = math.tanh %233 : vector<8x128xf32>
    %cst_79 = arith.constant 5.000000e-01 : f32
    %235 = vector.broadcast %cst_79 : f32 to vector<8x128xf32>
    %236 = arith.mulf %235, %234 : vector<8x128xf32>
    %cst_80 = arith.constant 5.000000e-01 : f32
    %237 = vector.broadcast %cst_80 : f32 to vector<8x128xf32>
    %238 = arith.addf %236, %237 : vector<8x128xf32>
    %239 = vector.extract_strided_slice %230 {offsets = [0, 128], sizes = [8, 128], strides = [1, 1]} : vector<8x512xf32> to vector<8x128xf32>
    %cst_81 = arith.constant 5.000000e-01 : f32
    %240 = vector.broadcast %cst_81 : f32 to vector<8x128xf32>
    %241 = arith.mulf %240, %239 : vector<8x128xf32>
    %242 = math.tanh %241 : vector<8x128xf32>
    %cst_82 = arith.constant 5.000000e-01 : f32
    %243 = vector.broadcast %cst_82 : f32 to vector<8x128xf32>
    %244 = arith.mulf %243, %242 : vector<8x128xf32>
    %cst_83 = arith.constant 5.000000e-01 : f32
    %245 = vector.broadcast %cst_83 : f32 to vector<8x128xf32>
    %246 = arith.addf %244, %245 : vector<8x128xf32>
    %247 = vector.extract_strided_slice %230 {offsets = [0, 256], sizes = [8, 128], strides = [1, 1]} : vector<8x512xf32> to vector<8x128xf32>
    %248 = math.tanh %247 : vector<8x128xf32>
    %249 = vector.extract_strided_slice %230 {offsets = [0, 384], sizes = [8, 128], strides = [1, 1]} : vector<8x512xf32> to vector<8x128xf32>
    %cst_84 = arith.constant 5.000000e-01 : f32
    %250 = vector.broadcast %cst_84 : f32 to vector<8x128xf32>
    %251 = arith.mulf %250, %249 : vector<8x128xf32>
    %252 = math.tanh %251 : vector<8x128xf32>
    %cst_85 = arith.constant 5.000000e-01 : f32
    %253 = vector.broadcast %cst_85 : f32 to vector<8x128xf32>
    %254 = arith.mulf %253, %252 : vector<8x128xf32>
    %cst_86 = arith.constant 5.000000e-01 : f32
    %255 = vector.broadcast %cst_86 : f32 to vector<8x128xf32>
    %256 = arith.addf %254, %255 : vector<8x128xf32>
    %257 = arith.mulf %246, %187 : vector<8x128xf32>
    %258 = arith.mulf %238, %248 : vector<8x128xf32>
    %259 = arith.addf %257, %258 : vector<8x128xf32>
    %260 = math.tanh %259 : vector<8x128xf32>
    %261 = arith.mulf %256, %260 : vector<8x128xf32>
    %262 = vector.extract_strided_slice %227 {offsets = [8, 0], sizes = [8, 512], strides = [1, 1]} : vector<16x512xf32> to vector<8x512xf32>
    %cst_87 = arith.constant dense<0.000000e+00> : vector<8x512xf32>
    %263 = tpu.matmul %223, %3, %cst_87 {dimension_numbers = #tpu.dot_dimension_numbers<[1], [0], [0], [1], [0, 0, 1, 1], [], []>} : vector<8x128xf32>, vector<128x512xf32>, vector<8x512xf32> -> vector<8x512xf32>
    %264 = arith.addf %262, %263 : vector<8x512xf32>
    %265 = vector.extract_strided_slice %264 {offsets = [0, 0], sizes = [8, 128], strides = [1, 1]} : vector<8x512xf32> to vector<8x128xf32>
    %cst_88 = arith.constant 5.000000e-01 : f32
    %266 = vector.broadcast %cst_88 : f32 to vector<8x128xf32>
    %267 = arith.mulf %266, %265 : vector<8x128xf32>
    %268 = math.tanh %267 : vector<8x128xf32>
    %cst_89 = arith.constant 5.000000e-01 : f32
    %269 = vector.broadcast %cst_89 : f32 to vector<8x128xf32>
    %270 = arith.mulf %269, %268 : vector<8x128xf32>
    %cst_90 = arith.constant 5.000000e-01 : f32
    %271 = vector.broadcast %cst_90 : f32 to vector<8x128xf32>
    %272 = arith.addf %270, %271 : vector<8x128xf32>
    %273 = vector.extract_strided_slice %264 {offsets = [0, 128], sizes = [8, 128], strides = [1, 1]} : vector<8x512xf32> to vector<8x128xf32>
    %cst_91 = arith.constant 5.000000e-01 : f32
    %274 = vector.broadcast %cst_91 : f32 to vector<8x128xf32>
    %275 = arith.mulf %274, %273 : vector<8x128xf32>
    %276 = math.tanh %275 : vector<8x128xf32>
    %cst_92 = arith.constant 5.000000e-01 : f32
    %277 = vector.broadcast %cst_92 : f32 to vector<8x128xf32>
    %278 = arith.mulf %277, %276 : vector<8x128xf32>
    %cst_93 = arith.constant 5.000000e-01 : f32
    %279 = vector.broadcast %cst_93 : f32 to vector<8x128xf32>
    %280 = arith.addf %278, %279 : vector<8x128xf32>
    %281 = vector.extract_strided_slice %264 {offsets = [0, 256], sizes = [8, 128], strides = [1, 1]} : vector<8x512xf32> to vector<8x128xf32>
    %282 = math.tanh %281 : vector<8x128xf32>
    %283 = vector.extract_strided_slice %264 {offsets = [0, 384], sizes = [8, 128], strides = [1, 1]} : vector<8x512xf32> to vector<8x128xf32>
    %cst_94 = arith.constant 5.000000e-01 : f32
    %284 = vector.broadcast %cst_94 : f32 to vector<8x128xf32>
    %285 = arith.mulf %284, %283 : vector<8x128xf32>
    %286 = math.tanh %285 : vector<8x128xf32>
    %cst_95 = arith.constant 5.000000e-01 : f32
    %287 = vector.broadcast %cst_95 : f32 to vector<8x128xf32>
    %288 = arith.mulf %287, %286 : vector<8x128xf32>
    %cst_96 = arith.constant 5.000000e-01 : f32
    %289 = vector.broadcast %cst_96 : f32 to vector<8x128xf32>
    %290 = arith.addf %288, %289 : vector<8x128xf32>
    %291 = arith.mulf %280, %221 : vector<8x128xf32>
    %292 = arith.mulf %272, %282 : vector<8x128xf32>
    %293 = arith.addf %291, %292 : vector<8x128xf32>
    %294 = math.tanh %293 : vector<8x128xf32>
    %295 = arith.mulf %290, %294 : vector<8x128xf32>
    %c4_i32 = arith.constant 4 : i32
    %296 = arith.index_cast %c4_i32 : i32 to index
    %c0_97 = arith.constant 0 : index
    %c0_98 = arith.constant 0 : index
    %297 = vector.load %arg2[%296, %c0_97, %c0_98] : memref<8x16x512xbf16, #tpu.memory_space<vmem>>, vector<1x16x512xbf16>
    %298 = vector.shape_cast %297 : vector<1x16x512xbf16> to vector<16x512xbf16>
    %299 = arith.extf %298 : vector<16x512xbf16> to vector<16x512xf32>
    %300 = vector.extract_strided_slice %299 {offsets = [0, 0], sizes = [8, 512], strides = [1, 1]} : vector<16x512xf32> to vector<8x512xf32>
    %cst_99 = arith.constant dense<0.000000e+00> : vector<8x512xf32>
    %301 = tpu.matmul %261, %3, %cst_99 {dimension_numbers = #tpu.dot_dimension_numbers<[1], [0], [0], [1], [0, 0, 1, 1], [], []>} : vector<8x128xf32>, vector<128x512xf32>, vector<8x512xf32> -> vector<8x512xf32>
    %302 = arith.addf %300, %301 : vector<8x512xf32>
    %303 = vector.extract_strided_slice %302 {offsets = [0, 0], sizes = [8, 128], strides = [1, 1]} : vector<8x512xf32> to vector<8x128xf32>
    %cst_100 = arith.constant 5.000000e-01 : f32
    %304 = vector.broadcast %cst_100 : f32 to vector<8x128xf32>
    %305 = arith.mulf %304, %303 : vector<8x128xf32>
    %306 = math.tanh %305 : vector<8x128xf32>
    %cst_101 = arith.constant 5.000000e-01 : f32
    %307 = vector.broadcast %cst_101 : f32 to vector<8x128xf32>
    %308 = arith.mulf %307, %306 : vector<8x128xf32>
    %cst_102 = arith.constant 5.000000e-01 : f32
    %309 = vector.broadcast %cst_102 : f32 to vector<8x128xf32>
    %310 = arith.addf %308, %309 : vector<8x128xf32>
    %311 = vector.extract_strided_slice %302 {offsets = [0, 128], sizes = [8, 128], strides = [1, 1]} : vector<8x512xf32> to vector<8x128xf32>
    %cst_103 = arith.constant 5.000000e-01 : f32
    %312 = vector.broadcast %cst_103 : f32 to vector<8x128xf32>
    %313 = arith.mulf %312, %311 : vector<8x128xf32>
    %314 = math.tanh %313 : vector<8x128xf32>
    %cst_104 = arith.constant 5.000000e-01 : f32
    %315 = vector.broadcast %cst_104 : f32 to vector<8x128xf32>
    %316 = arith.mulf %315, %314 : vector<8x128xf32>
    %cst_105 = arith.constant 5.000000e-01 : f32
    %317 = vector.broadcast %cst_105 : f32 to vector<8x128xf32>
    %318 = arith.addf %316, %317 : vector<8x128xf32>
    %319 = vector.extract_strided_slice %302 {offsets = [0, 256], sizes = [8, 128], strides = [1, 1]} : vector<8x512xf32> to vector<8x128xf32>
    %320 = math.tanh %319 : vector<8x128xf32>
    %321 = vector.extract_strided_slice %302 {offsets = [0, 384], sizes = [8, 128], strides = [1, 1]} : vector<8x512xf32> to vector<8x128xf32>
    %cst_106 = arith.constant 5.000000e-01 : f32
    %322 = vector.broadcast %cst_106 : f32 to vector<8x128xf32>
    %323 = arith.mulf %322, %321 : vector<8x128xf32>
    %324 = math.tanh %323 : vector<8x128xf32>
    %cst_107 = arith.constant 5.000000e-01 : f32
    %325 = vector.broadcast %cst_107 : f32 to vector<8x128xf32>
    %326 = arith.mulf %325, %324 : vector<8x128xf32>
    %cst_108 = arith.constant 5.000000e-01 : f32
    %327 = vector.broadcast %cst_108 : f32 to vector<8x128xf32>
    %328 = arith.addf %326, %327 : vector<8x128xf32>
    %329 = arith.mulf %318, %259 : vector<8x128xf32>
    %330 = arith.mulf %310, %320 : vector<8x128xf32>
    %331 = arith.addf %329, %330 : vector<8x128xf32>
    %332 = math.tanh %331 : vector<8x128xf32>
    %333 = arith.mulf %328, %332 : vector<8x128xf32>
    %334 = vector.extract_strided_slice %299 {offsets = [8, 0], sizes = [8, 512], strides = [1, 1]} : vector<16x512xf32> to vector<8x512xf32>
    %cst_109 = arith.constant dense<0.000000e+00> : vector<8x512xf32>
    %335 = tpu.matmul %295, %3, %cst_109 {dimension_numbers = #tpu.dot_dimension_numbers<[1], [0], [0], [1], [0, 0, 1, 1], [], []>} : vector<8x128xf32>, vector<128x512xf32>, vector<8x512xf32> -> vector<8x512xf32>
    %336 = arith.addf %334, %335 : vector<8x512xf32>
    %337 = vector.extract_strided_slice %336 {offsets = [0, 0], sizes = [8, 128], strides = [1, 1]} : vector<8x512xf32> to vector<8x128xf32>
    %cst_110 = arith.constant 5.000000e-01 : f32
    %338 = vector.broadcast %cst_110 : f32 to vector<8x128xf32>
    %339 = arith.mulf %338, %337 : vector<8x128xf32>
    %340 = math.tanh %339 : vector<8x128xf32>
    %cst_111 = arith.constant 5.000000e-01 : f32
    %341 = vector.broadcast %cst_111 : f32 to vector<8x128xf32>
    %342 = arith.mulf %341, %340 : vector<8x128xf32>
    %cst_112 = arith.constant 5.000000e-01 : f32
    %343 = vector.broadcast %cst_112 : f32 to vector<8x128xf32>
    %344 = arith.addf %342, %343 : vector<8x128xf32>
    %345 = vector.extract_strided_slice %336 {offsets = [0, 128], sizes = [8, 128], strides = [1, 1]} : vector<8x512xf32> to vector<8x128xf32>
    %cst_113 = arith.constant 5.000000e-01 : f32
    %346 = vector.broadcast %cst_113 : f32 to vector<8x128xf32>
    %347 = arith.mulf %346, %345 : vector<8x128xf32>
    %348 = math.tanh %347 : vector<8x128xf32>
    %cst_114 = arith.constant 5.000000e-01 : f32
    %349 = vector.broadcast %cst_114 : f32 to vector<8x128xf32>
    %350 = arith.mulf %349, %348 : vector<8x128xf32>
    %cst_115 = arith.constant 5.000000e-01 : f32
    %351 = vector.broadcast %cst_115 : f32 to vector<8x128xf32>
    %352 = arith.addf %350, %351 : vector<8x128xf32>
    %353 = vector.extract_strided_slice %336 {offsets = [0, 256], sizes = [8, 128], strides = [1, 1]} : vector<8x512xf32> to vector<8x128xf32>
    %354 = math.tanh %353 : vector<8x128xf32>
    %355 = vector.extract_strided_slice %336 {offsets = [0, 384], sizes = [8, 128], strides = [1, 1]} : vector<8x512xf32> to vector<8x128xf32>
    %cst_116 = arith.constant 5.000000e-01 : f32
    %356 = vector.broadcast %cst_116 : f32 to vector<8x128xf32>
    %357 = arith.mulf %356, %355 : vector<8x128xf32>
    %358 = math.tanh %357 : vector<8x128xf32>
    %cst_117 = arith.constant 5.000000e-01 : f32
    %359 = vector.broadcast %cst_117 : f32 to vector<8x128xf32>
    %360 = arith.mulf %359, %358 : vector<8x128xf32>
    %cst_118 = arith.constant 5.000000e-01 : f32
    %361 = vector.broadcast %cst_118 : f32 to vector<8x128xf32>
    %362 = arith.addf %360, %361 : vector<8x128xf32>
    %363 = arith.mulf %352, %293 : vector<8x128xf32>
    %364 = arith.mulf %344, %354 : vector<8x128xf32>
    %365 = arith.addf %363, %364 : vector<8x128xf32>
    %366 = math.tanh %365 : vector<8x128xf32>
    %367 = arith.mulf %362, %366 : vector<8x128xf32>
    %c5_i32 = arith.constant 5 : i32
    %368 = arith.index_cast %c5_i32 : i32 to index
    %c0_119 = arith.constant 0 : index
    %c0_120 = arith.constant 0 : index
    %369 = vector.load %arg2[%368, %c0_119, %c0_120] : memref<8x16x512xbf16, #tpu.memory_space<vmem>>, vector<1x16x512xbf16>
    %370 = vector.shape_cast %369 : vector<1x16x512xbf16> to vector<16x512xbf16>
    %371 = arith.extf %370 : vector<16x512xbf16> to vector<16x512xf32>
    %372 = vector.extract_strided_slice %371 {offsets = [0, 0], sizes = [8, 512], strides = [1, 1]} : vector<16x512xf32> to vector<8x512xf32>
    %cst_121 = arith.constant dense<0.000000e+00> : vector<8x512xf32>
    %373 = tpu.matmul %333, %3, %cst_121 {dimension_numbers = #tpu.dot_dimension_numbers<[1], [0], [0], [1], [0, 0, 1, 1], [], []>} : vector<8x128xf32>, vector<128x512xf32>, vector<8x512xf32> -> vector<8x512xf32>
    %374 = arith.addf %372, %373 : vector<8x512xf32>
    %375 = vector.extract_strided_slice %374 {offsets = [0, 0], sizes = [8, 128], strides = [1, 1]} : vector<8x512xf32> to vector<8x128xf32>
    %cst_122 = arith.constant 5.000000e-01 : f32
    %376 = vector.broadcast %cst_122 : f32 to vector<8x128xf32>
    %377 = arith.mulf %376, %375 : vector<8x128xf32>
    %378 = math.tanh %377 : vector<8x128xf32>
    %cst_123 = arith.constant 5.000000e-01 : f32
    %379 = vector.broadcast %cst_123 : f32 to vector<8x128xf32>
    %380 = arith.mulf %379, %378 : vector<8x128xf32>
    %cst_124 = arith.constant 5.000000e-01 : f32
    %381 = vector.broadcast %cst_124 : f32 to vector<8x128xf32>
    %382 = arith.addf %380, %381 : vector<8x128xf32>
    %383 = vector.extract_strided_slice %374 {offsets = [0, 128], sizes = [8, 128], strides = [1, 1]} : vector<8x512xf32> to vector<8x128xf32>
    %cst_125 = arith.constant 5.000000e-01 : f32
    %384 = vector.broadcast %cst_125 : f32 to vector<8x128xf32>
    %385 = arith.mulf %384, %383 : vector<8x128xf32>
    %386 = math.tanh %385 : vector<8x128xf32>
    %cst_126 = arith.constant 5.000000e-01 : f32
    %387 = vector.broadcast %cst_126 : f32 to vector<8x128xf32>
    %388 = arith.mulf %387, %386 : vector<8x128xf32>
    %cst_127 = arith.constant 5.000000e-01 : f32
    %389 = vector.broadcast %cst_127 : f32 to vector<8x128xf32>
    %390 = arith.addf %388, %389 : vector<8x128xf32>
    %391 = vector.extract_strided_slice %374 {offsets = [0, 256], sizes = [8, 128], strides = [1, 1]} : vector<8x512xf32> to vector<8x128xf32>
    %392 = math.tanh %391 : vector<8x128xf32>
    %393 = vector.extract_strided_slice %374 {offsets = [0, 384], sizes = [8, 128], strides = [1, 1]} : vector<8x512xf32> to vector<8x128xf32>
    %cst_128 = arith.constant 5.000000e-01 : f32
    %394 = vector.broadcast %cst_128 : f32 to vector<8x128xf32>
    %395 = arith.mulf %394, %393 : vector<8x128xf32>
    %396 = math.tanh %395 : vector<8x128xf32>
    %cst_129 = arith.constant 5.000000e-01 : f32
    %397 = vector.broadcast %cst_129 : f32 to vector<8x128xf32>
    %398 = arith.mulf %397, %396 : vector<8x128xf32>
    %cst_130 = arith.constant 5.000000e-01 : f32
    %399 = vector.broadcast %cst_130 : f32 to vector<8x128xf32>
    %400 = arith.addf %398, %399 : vector<8x128xf32>
    %401 = arith.mulf %390, %331 : vector<8x128xf32>
    %402 = arith.mulf %382, %392 : vector<8x128xf32>
    %403 = arith.addf %401, %402 : vector<8x128xf32>
    %404 = math.tanh %403 : vector<8x128xf32>
    %405 = arith.mulf %400, %404 : vector<8x128xf32>
    %406 = vector.extract_strided_slice %371 {offsets = [8, 0], sizes = [8, 512], strides = [1, 1]} : vector<16x512xf32> to vector<8x512xf32>
    %cst_131 = arith.constant dense<0.000000e+00> : vector<8x512xf32>
    %407 = tpu.matmul %367, %3, %cst_131 {dimension_numbers = #tpu.dot_dimension_numbers<[1], [0], [0], [1], [0, 0, 1, 1], [], []>} : vector<8x128xf32>, vector<128x512xf32>, vector<8x512xf32> -> vector<8x512xf32>
    %408 = arith.addf %406, %407 : vector<8x512xf32>
    %409 = vector.extract_strided_slice %408 {offsets = [0, 0], sizes = [8, 128], strides = [1, 1]} : vector<8x512xf32> to vector<8x128xf32>
    %cst_132 = arith.constant 5.000000e-01 : f32
    %410 = vector.broadcast %cst_132 : f32 to vector<8x128xf32>
    %411 = arith.mulf %410, %409 : vector<8x128xf32>
    %412 = math.tanh %411 : vector<8x128xf32>
    %cst_133 = arith.constant 5.000000e-01 : f32
    %413 = vector.broadcast %cst_133 : f32 to vector<8x128xf32>
    %414 = arith.mulf %413, %412 : vector<8x128xf32>
    %cst_134 = arith.constant 5.000000e-01 : f32
    %415 = vector.broadcast %cst_134 : f32 to vector<8x128xf32>
    %416 = arith.addf %414, %415 : vector<8x128xf32>
    %417 = vector.extract_strided_slice %408 {offsets = [0, 128], sizes = [8, 128], strides = [1, 1]} : vector<8x512xf32> to vector<8x128xf32>
    %cst_135 = arith.constant 5.000000e-01 : f32
    %418 = vector.broadcast %cst_135 : f32 to vector<8x128xf32>
    %419 = arith.mulf %418, %417 : vector<8x128xf32>
    %420 = math.tanh %419 : vector<8x128xf32>
    %cst_136 = arith.constant 5.000000e-01 : f32
    %421 = vector.broadcast %cst_136 : f32 to vector<8x128xf32>
    %422 = arith.mulf %421, %420 : vector<8x128xf32>
    %cst_137 = arith.constant 5.000000e-01 : f32
    %423 = vector.broadcast %cst_137 : f32 to vector<8x128xf32>
    %424 = arith.addf %422, %423 : vector<8x128xf32>
    %425 = vector.extract_strided_slice %408 {offsets = [0, 256], sizes = [8, 128], strides = [1, 1]} : vector<8x512xf32> to vector<8x128xf32>
    %426 = math.tanh %425 : vector<8x128xf32>
    %427 = vector.extract_strided_slice %408 {offsets = [0, 384], sizes = [8, 128], strides = [1, 1]} : vector<8x512xf32> to vector<8x128xf32>
    %cst_138 = arith.constant 5.000000e-01 : f32
    %428 = vector.broadcast %cst_138 : f32 to vector<8x128xf32>
    %429 = arith.mulf %428, %427 : vector<8x128xf32>
    %430 = math.tanh %429 : vector<8x128xf32>
    %cst_139 = arith.constant 5.000000e-01 : f32
    %431 = vector.broadcast %cst_139 : f32 to vector<8x128xf32>
    %432 = arith.mulf %431, %430 : vector<8x128xf32>
    %cst_140 = arith.constant 5.000000e-01 : f32
    %433 = vector.broadcast %cst_140 : f32 to vector<8x128xf32>
    %434 = arith.addf %432, %433 : vector<8x128xf32>
    %435 = arith.mulf %424, %365 : vector<8x128xf32>
    %436 = arith.mulf %416, %426 : vector<8x128xf32>
    %437 = arith.addf %435, %436 : vector<8x128xf32>
    %438 = math.tanh %437 : vector<8x128xf32>
    %439 = arith.mulf %434, %438 : vector<8x128xf32>
    %c6_i32 = arith.constant 6 : i32
    %440 = arith.index_cast %c6_i32 : i32 to index
    %c0_141 = arith.constant 0 : index
    %c0_142 = arith.constant 0 : index
    %441 = vector.load %arg2[%440, %c0_141, %c0_142] : memref<8x16x512xbf16, #tpu.memory_space<vmem>>, vector<1x16x512xbf16>
    %442 = vector.shape_cast %441 : vector<1x16x512xbf16> to vector<16x512xbf16>
    %443 = arith.extf %442 : vector<16x512xbf16> to vector<16x512xf32>
    %444 = vector.extract_strided_slice %443 {offsets = [0, 0], sizes = [8, 512], strides = [1, 1]} : vector<16x512xf32> to vector<8x512xf32>
    %cst_143 = arith.constant dense<0.000000e+00> : vector<8x512xf32>
    %445 = tpu.matmul %405, %3, %cst_143 {dimension_numbers = #tpu.dot_dimension_numbers<[1], [0], [0], [1], [0, 0, 1, 1], [], []>} : vector<8x128xf32>, vector<128x512xf32>, vector<8x512xf32> -> vector<8x512xf32>
    %446 = arith.addf %444, %445 : vector<8x512xf32>
    %447 = vector.extract_strided_slice %446 {offsets = [0, 0], sizes = [8, 128], strides = [1, 1]} : vector<8x512xf32> to vector<8x128xf32>
    %cst_144 = arith.constant 5.000000e-01 : f32
    %448 = vector.broadcast %cst_144 : f32 to vector<8x128xf32>
    %449 = arith.mulf %448, %447 : vector<8x128xf32>
    %450 = math.tanh %449 : vector<8x128xf32>
    %cst_145 = arith.constant 5.000000e-01 : f32
    %451 = vector.broadcast %cst_145 : f32 to vector<8x128xf32>
    %452 = arith.mulf %451, %450 : vector<8x128xf32>
    %cst_146 = arith.constant 5.000000e-01 : f32
    %453 = vector.broadcast %cst_146 : f32 to vector<8x128xf32>
    %454 = arith.addf %452, %453 : vector<8x128xf32>
    %455 = vector.extract_strided_slice %446 {offsets = [0, 128], sizes = [8, 128], strides = [1, 1]} : vector<8x512xf32> to vector<8x128xf32>
    %cst_147 = arith.constant 5.000000e-01 : f32
    %456 = vector.broadcast %cst_147 : f32 to vector<8x128xf32>
    %457 = arith.mulf %456, %455 : vector<8x128xf32>
    %458 = math.tanh %457 : vector<8x128xf32>
    %cst_148 = arith.constant 5.000000e-01 : f32
    %459 = vector.broadcast %cst_148 : f32 to vector<8x128xf32>
    %460 = arith.mulf %459, %458 : vector<8x128xf32>
    %cst_149 = arith.constant 5.000000e-01 : f32
    %461 = vector.broadcast %cst_149 : f32 to vector<8x128xf32>
    %462 = arith.addf %460, %461 : vector<8x128xf32>
    %463 = vector.extract_strided_slice %446 {offsets = [0, 256], sizes = [8, 128], strides = [1, 1]} : vector<8x512xf32> to vector<8x128xf32>
    %464 = math.tanh %463 : vector<8x128xf32>
    %465 = vector.extract_strided_slice %446 {offsets = [0, 384], sizes = [8, 128], strides = [1, 1]} : vector<8x512xf32> to vector<8x128xf32>
    %cst_150 = arith.constant 5.000000e-01 : f32
    %466 = vector.broadcast %cst_150 : f32 to vector<8x128xf32>
    %467 = arith.mulf %466, %465 : vector<8x128xf32>
    %468 = math.tanh %467 : vector<8x128xf32>
    %cst_151 = arith.constant 5.000000e-01 : f32
    %469 = vector.broadcast %cst_151 : f32 to vector<8x128xf32>
    %470 = arith.mulf %469, %468 : vector<8x128xf32>
    %cst_152 = arith.constant 5.000000e-01 : f32
    %471 = vector.broadcast %cst_152 : f32 to vector<8x128xf32>
    %472 = arith.addf %470, %471 : vector<8x128xf32>
    %473 = arith.mulf %462, %403 : vector<8x128xf32>
    %474 = arith.mulf %454, %464 : vector<8x128xf32>
    %475 = arith.addf %473, %474 : vector<8x128xf32>
    %476 = math.tanh %475 : vector<8x128xf32>
    %477 = arith.mulf %472, %476 : vector<8x128xf32>
    %478 = vector.extract_strided_slice %443 {offsets = [8, 0], sizes = [8, 512], strides = [1, 1]} : vector<16x512xf32> to vector<8x512xf32>
    %cst_153 = arith.constant dense<0.000000e+00> : vector<8x512xf32>
    %479 = tpu.matmul %439, %3, %cst_153 {dimension_numbers = #tpu.dot_dimension_numbers<[1], [0], [0], [1], [0, 0, 1, 1], [], []>} : vector<8x128xf32>, vector<128x512xf32>, vector<8x512xf32> -> vector<8x512xf32>
    %480 = arith.addf %478, %479 : vector<8x512xf32>
    %481 = vector.extract_strided_slice %480 {offsets = [0, 0], sizes = [8, 128], strides = [1, 1]} : vector<8x512xf32> to vector<8x128xf32>
    %cst_154 = arith.constant 5.000000e-01 : f32
    %482 = vector.broadcast %cst_154 : f32 to vector<8x128xf32>
    %483 = arith.mulf %482, %481 : vector<8x128xf32>
    %484 = math.tanh %483 : vector<8x128xf32>
    %cst_155 = arith.constant 5.000000e-01 : f32
    %485 = vector.broadcast %cst_155 : f32 to vector<8x128xf32>
    %486 = arith.mulf %485, %484 : vector<8x128xf32>
    %cst_156 = arith.constant 5.000000e-01 : f32
    %487 = vector.broadcast %cst_156 : f32 to vector<8x128xf32>
    %488 = arith.addf %486, %487 : vector<8x128xf32>
    %489 = vector.extract_strided_slice %480 {offsets = [0, 128], sizes = [8, 128], strides = [1, 1]} : vector<8x512xf32> to vector<8x128xf32>
    %cst_157 = arith.constant 5.000000e-01 : f32
    %490 = vector.broadcast %cst_157 : f32 to vector<8x128xf32>
    %491 = arith.mulf %490, %489 : vector<8x128xf32>
    %492 = math.tanh %491 : vector<8x128xf32>
    %cst_158 = arith.constant 5.000000e-01 : f32
    %493 = vector.broadcast %cst_158 : f32 to vector<8x128xf32>
    %494 = arith.mulf %493, %492 : vector<8x128xf32>
    %cst_159 = arith.constant 5.000000e-01 : f32
    %495 = vector.broadcast %cst_159 : f32 to vector<8x128xf32>
    %496 = arith.addf %494, %495 : vector<8x128xf32>
    %497 = vector.extract_strided_slice %480 {offsets = [0, 256], sizes = [8, 128], strides = [1, 1]} : vector<8x512xf32> to vector<8x128xf32>
    %498 = math.tanh %497 : vector<8x128xf32>
    %499 = vector.extract_strided_slice %480 {offsets = [0, 384], sizes = [8, 128], strides = [1, 1]} : vector<8x512xf32> to vector<8x128xf32>
    %cst_160 = arith.constant 5.000000e-01 : f32
    %500 = vector.broadcast %cst_160 : f32 to vector<8x128xf32>
    %501 = arith.mulf %500, %499 : vector<8x128xf32>
    %502 = math.tanh %501 : vector<8x128xf32>
    %cst_161 = arith.constant 5.000000e-01 : f32
    %503 = vector.broadcast %cst_161 : f32 to vector<8x128xf32>
    %504 = arith.mulf %503, %502 : vector<8x128xf32>
    %cst_162 = arith.constant 5.000000e-01 : f32
    %505 = vector.broadcast %cst_162 : f32 to vector<8x128xf32>
    %506 = arith.addf %504, %505 : vector<8x128xf32>
    %507 = arith.mulf %496, %437 : vector<8x128xf32>
    %508 = arith.mulf %488, %498 : vector<8x128xf32>
    %509 = arith.addf %507, %508 : vector<8x128xf32>
    %510 = math.tanh %509 : vector<8x128xf32>
    %511 = arith.mulf %506, %510 : vector<8x128xf32>
    %c7_i32 = arith.constant 7 : i32
    %512 = arith.index_cast %c7_i32 : i32 to index
    %c0_163 = arith.constant 0 : index
    %c0_164 = arith.constant 0 : index
    %513 = vector.load %arg2[%512, %c0_163, %c0_164] : memref<8x16x512xbf16, #tpu.memory_space<vmem>>, vector<1x16x512xbf16>
    %514 = vector.shape_cast %513 : vector<1x16x512xbf16> to vector<16x512xbf16>
    %515 = arith.extf %514 : vector<16x512xbf16> to vector<16x512xf32>
    %516 = vector.extract_strided_slice %515 {offsets = [0, 0], sizes = [8, 512], strides = [1, 1]} : vector<16x512xf32> to vector<8x512xf32>
    %cst_165 = arith.constant dense<0.000000e+00> : vector<8x512xf32>
    %517 = tpu.matmul %477, %3, %cst_165 {dimension_numbers = #tpu.dot_dimension_numbers<[1], [0], [0], [1], [0, 0, 1, 1], [], []>} : vector<8x128xf32>, vector<128x512xf32>, vector<8x512xf32> -> vector<8x512xf32>
    %518 = arith.addf %516, %517 : vector<8x512xf32>
    %519 = vector.extract_strided_slice %518 {offsets = [0, 0], sizes = [8, 128], strides = [1, 1]} : vector<8x512xf32> to vector<8x128xf32>
    %cst_166 = arith.constant 5.000000e-01 : f32
    %520 = vector.broadcast %cst_166 : f32 to vector<8x128xf32>
    %521 = arith.mulf %520, %519 : vector<8x128xf32>
    %522 = math.tanh %521 : vector<8x128xf32>
    %cst_167 = arith.constant 5.000000e-01 : f32
    %523 = vector.broadcast %cst_167 : f32 to vector<8x128xf32>
    %524 = arith.mulf %523, %522 : vector<8x128xf32>
    %cst_168 = arith.constant 5.000000e-01 : f32
    %525 = vector.broadcast %cst_168 : f32 to vector<8x128xf32>
    %526 = arith.addf %524, %525 : vector<8x128xf32>
    %527 = vector.extract_strided_slice %518 {offsets = [0, 128], sizes = [8, 128], strides = [1, 1]} : vector<8x512xf32> to vector<8x128xf32>
    %cst_169 = arith.constant 5.000000e-01 : f32
    %528 = vector.broadcast %cst_169 : f32 to vector<8x128xf32>
    %529 = arith.mulf %528, %527 : vector<8x128xf32>
    %530 = math.tanh %529 : vector<8x128xf32>
    %cst_170 = arith.constant 5.000000e-01 : f32
    %531 = vector.broadcast %cst_170 : f32 to vector<8x128xf32>
    %532 = arith.mulf %531, %530 : vector<8x128xf32>
    %cst_171 = arith.constant 5.000000e-01 : f32
    %533 = vector.broadcast %cst_171 : f32 to vector<8x128xf32>
    %534 = arith.addf %532, %533 : vector<8x128xf32>
    %535 = vector.extract_strided_slice %518 {offsets = [0, 256], sizes = [8, 128], strides = [1, 1]} : vector<8x512xf32> to vector<8x128xf32>
    %536 = math.tanh %535 : vector<8x128xf32>
    %537 = vector.extract_strided_slice %518 {offsets = [0, 384], sizes = [8, 128], strides = [1, 1]} : vector<8x512xf32> to vector<8x128xf32>
    %cst_172 = arith.constant 5.000000e-01 : f32
    %538 = vector.broadcast %cst_172 : f32 to vector<8x128xf32>
    %539 = arith.mulf %538, %537 : vector<8x128xf32>
    %540 = math.tanh %539 : vector<8x128xf32>
    %cst_173 = arith.constant 5.000000e-01 : f32
    %541 = vector.broadcast %cst_173 : f32 to vector<8x128xf32>
    %542 = arith.mulf %541, %540 : vector<8x128xf32>
    %cst_174 = arith.constant 5.000000e-01 : f32
    %543 = vector.broadcast %cst_174 : f32 to vector<8x128xf32>
    %544 = arith.addf %542, %543 : vector<8x128xf32>
    %545 = arith.mulf %534, %475 : vector<8x128xf32>
    %546 = arith.mulf %526, %536 : vector<8x128xf32>
    %547 = arith.addf %545, %546 : vector<8x128xf32>
    %548 = math.tanh %547 : vector<8x128xf32>
    %549 = arith.mulf %544, %548 : vector<8x128xf32>
    %550 = vector.extract_strided_slice %515 {offsets = [8, 0], sizes = [8, 512], strides = [1, 1]} : vector<16x512xf32> to vector<8x512xf32>
    %cst_175 = arith.constant dense<0.000000e+00> : vector<8x512xf32>
    %551 = tpu.matmul %511, %3, %cst_175 {dimension_numbers = #tpu.dot_dimension_numbers<[1], [0], [0], [1], [0, 0, 1, 1], [], []>} : vector<8x128xf32>, vector<128x512xf32>, vector<8x512xf32> -> vector<8x512xf32>
    %552 = arith.addf %550, %551 : vector<8x512xf32>
    %553 = vector.extract_strided_slice %552 {offsets = [0, 0], sizes = [8, 128], strides = [1, 1]} : vector<8x512xf32> to vector<8x128xf32>
    %cst_176 = arith.constant 5.000000e-01 : f32
    %554 = vector.broadcast %cst_176 : f32 to vector<8x128xf32>
    %555 = arith.mulf %554, %553 : vector<8x128xf32>
    %556 = math.tanh %555 : vector<8x128xf32>
    %cst_177 = arith.constant 5.000000e-01 : f32
    %557 = vector.broadcast %cst_177 : f32 to vector<8x128xf32>
    %558 = arith.mulf %557, %556 : vector<8x128xf32>
    %cst_178 = arith.constant 5.000000e-01 : f32
    %559 = vector.broadcast %cst_178 : f32 to vector<8x128xf32>
    %560 = arith.addf %558, %559 : vector<8x128xf32>
    %561 = vector.extract_strided_slice %552 {offsets = [0, 128], sizes = [8, 128], strides = [1, 1]} : vector<8x512xf32> to vector<8x128xf32>
    %cst_179 = arith.constant 5.000000e-01 : f32
    %562 = vector.broadcast %cst_179 : f32 to vector<8x128xf32>
    %563 = arith.mulf %562, %561 : vector<8x128xf32>
    %564 = math.tanh %563 : vector<8x128xf32>
    %cst_180 = arith.constant 5.000000e-01 : f32
    %565 = vector.broadcast %cst_180 : f32 to vector<8x128xf32>
    %566 = arith.mulf %565, %564 : vector<8x128xf32>
    %cst_181 = arith.constant 5.000000e-01 : f32
    %567 = vector.broadcast %cst_181 : f32 to vector<8x128xf32>
    %568 = arith.addf %566, %567 : vector<8x128xf32>
    %569 = vector.extract_strided_slice %552 {offsets = [0, 256], sizes = [8, 128], strides = [1, 1]} : vector<8x512xf32> to vector<8x128xf32>
    %570 = math.tanh %569 : vector<8x128xf32>
    %571 = vector.extract_strided_slice %552 {offsets = [0, 384], sizes = [8, 128], strides = [1, 1]} : vector<8x512xf32> to vector<8x128xf32>
    %cst_182 = arith.constant 5.000000e-01 : f32
    %572 = vector.broadcast %cst_182 : f32 to vector<8x128xf32>
    %573 = arith.mulf %572, %571 : vector<8x128xf32>
    %574 = math.tanh %573 : vector<8x128xf32>
    %cst_183 = arith.constant 5.000000e-01 : f32
    %575 = vector.broadcast %cst_183 : f32 to vector<8x128xf32>
    %576 = arith.mulf %575, %574 : vector<8x128xf32>
    %cst_184 = arith.constant 5.000000e-01 : f32
    %577 = vector.broadcast %cst_184 : f32 to vector<8x128xf32>
    %578 = arith.addf %576, %577 : vector<8x128xf32>
    %579 = arith.mulf %568, %509 : vector<8x128xf32>
    %580 = arith.mulf %560, %570 : vector<8x128xf32>
    %581 = arith.addf %579, %580 : vector<8x128xf32>
    %582 = math.tanh %581 : vector<8x128xf32>
    %583 = arith.mulf %578, %582 : vector<8x128xf32>
    %c8_i32 = arith.constant 8 : i32
    %c0_185 = arith.constant 0 : index
    %c0_186 = arith.constant 0 : index
    %584 = vector.load %arg4[%c0_185, %c0_186] : memref<16x128xf32, #tpu.memory_space<vmem>>, vector<8x128xf32>
    tpu.vector_store %arg4[%c0_185, %c0_186], %549 {strides = array<i32>} : memref<16x128xf32, #tpu.memory_space<vmem>>, vector<8x128xf32>,
    %c0_187 = arith.constant 0 : index
    %c0_188 = arith.constant 0 : index
    %585 = vector.load %arg5[%c0_187, %c0_188] : memref<16x128xf32, #tpu.memory_space<vmem>>, vector<8x128xf32>
    tpu.vector_store %arg5[%c0_187, %c0_188], %547 {strides = array<i32>} : memref<16x128xf32, #tpu.memory_space<vmem>>, vector<8x128xf32>,
    %c8_189 = arith.constant 8 : index
    %c0_190 = arith.constant 0 : index
    %586 = vector.load %arg4[%c8_189, %c0_190] : memref<16x128xf32, #tpu.memory_space<vmem>>, vector<8x128xf32>
    tpu.vector_store %arg4[%c8_189, %c0_190], %583 {strides = array<i32>} : memref<16x128xf32, #tpu.memory_space<vmem>>, vector<8x128xf32>,
    %c8_191 = arith.constant 8 : index
    %c0_192 = arith.constant 0 : index
    %587 = vector.load %arg5[%c8_191, %c0_192] : memref<16x128xf32, #tpu.memory_space<vmem>>, vector<8x128xf32>
    tpu.vector_store %arg5[%c8_191, %c0_192], %581 {strides = array<i32>} : memref<16x128xf32, #tpu.memory_space<vmem>>, vector<8x128xf32>,
    return
  }
  func.func @transform_0(%arg0: i32, %arg1: i32) -> (i32, i32, i32) {
    %c0_i32 = arith.constant 0 : i32
    %c0_i32_0 = arith.constant 0 : i32
    return %arg1, %arg0, %c0_i32 : i32, i32, i32
  }
  func.func @transform_1(%arg0: i32, %arg1: i32) -> (i32, i32) {
    %c0_i32 = arith.constant 0 : i32
    %c0_i32_0 = arith.constant 0 : i32
    %c0_i32_1 = arith.constant 0 : i32
    return %c0_i32, %c0_i32_0 : i32, i32
  }
  func.func @transform_2(%arg0: i32, %arg1: i32) -> (i32, i32) {
    %c0_i32 = arith.constant 0 : i32
    %c0_i32_0 = arith.constant 0 : i32
    return %arg0, %c0_i32 : i32, i32
  }
  func.func @transform_3(%arg0: i32, %arg1: i32) -> (i32, i32) {
    %c0_i32 = arith.constant 0 : i32
    %c0_i32_0 = arith.constant 0 : i32
    return %arg0, %c0_i32 : i32, i32
  }
}

</mosaic_0001>

<llo_original>
// kernel: lstm_forward.1
$region0: #{lstm_forward.1}
  #allocation0 [shape = 'u32[]', space=smem, size = 0x4, offset = 0x4, fixed_abs, tag = 'smem constant byte address 0x4 - core index']
  #allocation1 [shape = 'u32[72,128]{1,0:T(1,128)}', space=vmem, size = 0x9000, scoped, tag = 'internal scratch']
  %s0 = inlined_call_operand.vmem [shape: bf16[8,16,512], index: 0, kind: input, shape index: {}]
  %s1 = inlined_call_operand.vmem [shape: f32[128,512], index: 1, kind: input, shape index: {}]
  %s2 = inlined_call_operand.vmem [shape: f32[16,128], index: 2, kind: output, shape index: {0}]
  %s3 = inlined_call_operand.vmem [shape: f32[16,128], index: 3, kind: output, shape index: {1}]
  %4 = xla_tuple %s2, %s3
  %s5 = sld [smem:[#allocation0]]
  $region30: #{lstm_forward.1} parent=0
    _
  %s7 = ssub.s32 1, %s5
  %s8 = scalar_select 0, %s7, %s5
  // Predicated region
  $region2: #{lstm_forward.1} parent=0 // pred_check
    _
  $region3: #{lstm_forward.1} parent=0 // pred_check_branch
    %10 = sbr.rel (0) target = $region5
  $region4: #{lstm_forward.1} parent=0 // pred_region
    _
  $region5: #{lstm_forward.1} parent=0 // pred_fallthru
    _
  // Predicated region
  $region6: #{lstm_forward.1} parent=0 // pred_check
    _
  $region7: #{lstm_forward.1} parent=0 // pred_check_branch
    %12 = sbr.rel (0) target = $region9
  $region8: #{lstm_forward.1} parent=0 // pred_region
    _
  $region9: #{lstm_forward.1} parent=0 // pred_fallthru
    _
  %p13 = scmp.eq.s32.totalorder 0, 0
  // Predicated region
  $region10: #{lstm_forward.1} parent=0 // pred_check
    %p14 = pneg %p13
  $region11: #{lstm_forward.1} parent=0 // pred_check_branch
    %16 = sbr.rel (%p14) target = $region13
  $region12: #{lstm_forward.1} parent=0 // pred_region
    %17 = vst [vmem:[%s2] sm:$0xff] 0.0
    %18 = vst [vmem:[%s2 + $0x8] sm:$0xff] 0.0
    %19 = vst [vmem:[%s3] sm:$0xff] 0.0
    %20 = vst [vmem:[%s3 + $0x8] sm:$0xff] 0.0
  $region13: #{lstm_forward.1} parent=0 // pred_fallthru
    _
  %v21 = vld [vmem:[%s1] sm:$0xff]
  %v22 = vld [vmem:[%s1 + $0x8] sm:$0xff]
  %v23 = vld [vmem:[%s1 + $0x10] sm:$0xff]
  %v24 = vld [vmem:[%s1 + $0x18] sm:$0xff]
  %v25 = vld [vmem:[%s1 + $0x20] sm:$0xff]
  %v26 = vld [vmem:[%s1 + $0x28] sm:$0xff]
  %v27 = vld [vmem:[%s1 + $0x30] sm:$0xff]
  %v28 = vld [vmem:[%s1 + $0x38] sm:$0xff]
  %v29 = vld [vmem:[%s1 + $0x40] sm:$0xff]
  %v30 = vld [vmem:[%s1 + $0x48] sm:$0xff]
  %v31 = vld [vmem:[%s1 + $0x50] sm:$0xff]
  %v32 = vld [vmem:[%s1 + $0x58] sm:$0xff]
  %v33 = vld [vmem:[%s1 + $0x60] sm:$0xff]
  %v34 = vld [vmem:[%s1 + $0x68] sm:$0xff]
  %v35 = vld [vmem:[%s1 + $0x70] sm:$0xff]
  %v36 = vld [vmem:[%s1 + $0x78] sm:$0xff]
  %v37 = vld [vmem:[%s1 + $0x80] sm:$0xff]
  %v38 = vld [vmem:[%s1 + $0x88] sm:$0xff]
  %v39 = vld [vmem:[%s1 + $0x90] sm:$0xff]
  %v40 = vld [vmem:[%s1 + $0x98] sm:$0xff]
  %v41 = vld [vmem:[%s1 + $0xa0] sm:$0xff]
  %v42 = vld [vmem:[%s1 + $0xa8] sm:$0xff]
  %v43 = vld [vmem:[%s1 + $0xb0] sm:$0xff]
  %v44 = vld [vmem:[%s1 + $0xb8] sm:$0xff]
  %v45 = vld [vmem:[%s1 + $0xc0] sm:$0xff]
  %v46 = vld [vmem:[%s1 + $0xc8] sm:$0xff]
  %v47 = vld [vmem:[%s1 + $0xd0] sm:$0xff]
  %v48 = vld [vmem:[%s1 + $0xd8] sm:$0xff]
  %v49 = vld [vmem:[%s1 + $0xe0] sm:$0xff]
  %v50 = vld [vmem:[%s1 + $0xe8] sm:$0xff]
  %v51 = vld [vmem:[%s1 + $0xf0] sm:$0xff]
  %v52 = vld [vmem:[%s1 + $0xf8] sm:$0xff]
  %v53 = vld [vmem:[%s1 + $0x100] sm:$0xff]
  %v54 = vld [vmem:[%s1 + $0x108] sm:$0xff]
  %v55 = vld [vmem:[%s1 + $0x110] sm:$0xff]
  %v56 = vld [vmem:[%s1 + $0x118] sm:$0xff]
  %v57 = vld [vmem:[%s1 + $0x120] sm:$0xff]
  %v58 = vld [vmem:[%s1 + $0x128] sm:$0xff]
  %v59 = vld [vmem:[%s1 + $0x130] sm:$0xff]
  %v60 = vld [vmem:[%s1 + $0x138] sm:$0xff]
  %v61 = vld [vmem:[%s1 + $0x140] sm:$0xff]
  %v62 = vld [vmem:[%s1 + $0x148] sm:$0xff]
  %v63 = vld [vmem:[%s1 + $0x150] sm:$0xff]
  %v64 = vld [vmem:[%s1 + $0x158] sm:$0xff]
  %v65 = vld [vmem:[%s1 + $0x160] sm:$0xff]
  %v66 = vld [vmem:[%s1 + $0x168] sm:$0xff]
  %v67 = vld [vmem:[%s1 + $0x170] sm:$0xff]
  %v68 = vld [vmem:[%s1 + $0x178] sm:$0xff]
  %v69 = vld [vmem:[%s1 + $0x180] sm:$0xff]
  %v70 = vld [vmem:[%s1 + $0x188] sm:$0xff]
  %v71 = vld [vmem:[%s1 + $0x190] sm:$0xff]
  %v72 = vld [vmem:[%s1 + $0x198] sm:$0xff]
  %v73 = vld [vmem:[%s1 + $0x1a0] sm:$0xff]
  %v74 = vld [vmem:[%s1 + $0x1a8] sm:$0xff]
  %v75 = vld [vmem:[%s1 + $0x1b0] sm:$0xff]
  %v76 = vld [vmem:[%s1 + $0x1b8] sm:$0xff]
  %v77 = vld [vmem:[%s1 + $0x1c0] sm:$0xff]
  %v78 = vld [vmem:[%s1 + $0x1c8] sm:$0xff]
  %v79 = vld [vmem:[%s1 + $0x1d0] sm:$0xff]
  %v80 = vld [vmem:[%s1 + $0x1d8] sm:$0xff]
  %v81 = vld [vmem:[%s1 + $0x1e0] sm:$0xff]
  %v82 = vld [vmem:[%s1 + $0x1e8] sm:$0xff]
  %v83 = vld [vmem:[%s1 + $0x1f0] sm:$0xff]
  %v84 = vld [vmem:[%s1 + $0x1f8] sm:$0xff]
  %v85 = vld [vmem:[%s2] sm:$0xff]
  %v86 = vld [vmem:[%s3] sm:$0xff]
  %v87 = vld [vmem:[%s2 + $0x8] sm:$0xff]
  %v88 = vld [vmem:[%s3 + $0x8] sm:$0xff]
  %v89 = vld [vmem:[%s0] sm:$0xff]
  %v90 = vld [vmem:[%s0 + $0x8] sm:$0xff]
  %v91 = vld [vmem:[%s0 + $0x10] sm:$0xff]
  %v92 = vld [vmem:[%s0 + $0x18] sm:$0xff]
  %v93 = vunpack.c.l.bf16 %v89
  %v94 = vunpack.c.h.bf16 %v89
  %v95 = vunpack.c.l.bf16 %v90
  %v96 = vunpack.c.h.bf16 %v90
  %v97 = vunpack.c.l.bf16 %v91
  %v98 = vunpack.c.h.bf16 %v91
  %v99 = vunpack.c.l.bf16 %v92
  %v100 = vunpack.c.h.bf16 %v92
  %101 = vmatpush.msra.mxu0 %v81
  %102 = vmatpush.msra.mxu0 %v77
  %103 = vmatpush.msra.mxu0 %v73
  %104 = vmatpush.msra.mxu0 %v69
  %105 = vmatpush.msra.mxu0 %v65
  %106 = vmatpush.msra.mxu0 %v61
  %107 = vmatpush.msra.mxu0 %v57
  %108 = vmatpush.msra.mxu0 %v53
  %109 = vmatpush.msra.mxu0 %v49
  %110 = vmatpush.msra.mxu0 %v45
  %111 = vmatpush.msra.mxu0 %v41
  %112 = vmatpush.msra.mxu0 %v37
  %113 = vmatpush.msra.mxu0 %v33
  %114 = vmatpush.msra.mxu0 %v29
  %115 = vmatpush.msra.mxu0 %v25
  %116 = vmatpush.msra.mxu0 %v21
  %117 = vmatmul.f32.gmra.mxu0 %v85
  %v118 = vpop.f32.mrf.mxu0
  %v119 = vadd.f32 0.0, %v118
  %120 = vdwg.mxu0
  %121 = vmatpush.msra.mxu0 %v82
  %122 = vmatpush.msra.mxu0 %v78
  %123 = vmatpush.msra.mxu0 %v74
  %124 = vmatpush.msra.mxu0 %v70
  %125 = vmatpush.msra.mxu0 %v66
  %126 = vmatpush.msra.mxu0 %v62
  %127 = vmatpush.msra.mxu0 %v58
  %128 = vmatpush.msra.mxu0 %v54
  %129 = vmatpush.msra.mxu0 %v50
  %130 = vmatpush.msra.mxu0 %v46
  %131 = vmatpush.msra.mxu0 %v42
  %132 = vmatpush.msra.mxu0 %v38
  %133 = vmatpush.msra.mxu0 %v34
  %134 = vmatpush.msra.mxu0 %v30
  %135 = vmatpush.msra.mxu0 %v26
  %136 = vmatpush.msra.mxu0 %v22
  %137 = vmatmul.f32.gmra.mxu0 %v85
  %v138 = vpop.f32.mrf.mxu0
  %v139 = vadd.f32 0.0, %v138
  %140 = vdwg.mxu0
  %141 = vmatpush.msra.mxu0 %v83
  %142 = vmatpush.msra.mxu0 %v79
  %143 = vmatpush.msra.mxu0 %v75
  %144 = vmatpush.msra.mxu0 %v71
  %145 = vmatpush.msra.mxu0 %v67
  %146 = vmatpush.msra.mxu0 %v63
  %147 = vmatpush.msra.mxu0 %v59
  %148 = vmatpush.msra.mxu0 %v55
  %149 = vmatpush.msra.mxu0 %v51
  %150 = vmatpush.msra.mxu0 %v47
  %151 = vmatpush.msra.mxu0 %v43
  %152 = vmatpush.msra.mxu0 %v39
  %153 = vmatpush.msra.mxu0 %v35
  %154 = vmatpush.msra.mxu0 %v31
  %155 = vmatpush.msra.mxu0 %v27
  %156 = vmatpush.msra.mxu0 %v23
  %157 = vmatmul.f32.gmra.mxu0 %v85
  %v158 = vpop.f32.mrf.mxu0
  %v159 = vadd.f32 0.0, %v158
  %160 = vdwg.mxu0
  %161 = vmatpush.msra.mxu0 %v84
  %162 = vmatpush.msra.mxu0 %v80
  %163 = vmatpush.msra.mxu0 %v76
  %164 = vmatpush.msra.mxu0 %v72
  %165 = vmatpush.msra.mxu0 %v68
  %166 = vmatpush.msra.mxu0 %v64
  %167 = vmatpush.msra.mxu0 %v60
  %168 = vmatpush.msra.mxu0 %v56
  %169 = vmatpush.msra.mxu0 %v52
  %170 = vmatpush.msra.mxu0 %v48
  %171 = vmatpush.msra.mxu0 %v44
  %172 = vmatpush.msra.mxu0 %v40
  %173 = vmatpush.msra.mxu0 %v36
  %174 = vmatpush.msra.mxu0 %v32
  %175 = vmatpush.msra.mxu0 %v28
  %176 = vmatpush.msra.mxu0 %v24
  %177 = vmatmul.f32.gmra.mxu0 %v85
  %v178 = vpop.f32.mrf.mxu0
  %v179 = vadd.f32 0.0, %v178
  %180 = vdwg.mxu0
  %v181 = vadd.f32 %v93, %v119
  %v182 = vadd.f32 %v94, %v139
  %v183 = vadd.f32 %v95, %v159
  %v184 = vadd.f32 %v96, %v179
  %v185 = vmul.f32 %v181, 0.5
  %v186 = vtanh.pop %v185
  %v187 = vmul.f32 %v186, 0.5
  %v188 = vadd.f32 %v187, 0.5
  %v189 = vmul.f32 %v182, 0.5
  %v190 = vtanh.pop %v189
  %v191 = vmul.f32 %v190, 0.5
  %v192 = vadd.f32 %v191, 0.5
  %v193 = vtanh.pop %v183
  %v194 = vmul.f32 %v184, 0.5
  %v195 = vtanh.pop %v194
  %v196 = vmul.f32 %v195, 0.5
  %v197 = vadd.f32 %v196, 0.5
  %v198 = vmul.f32 %v192, %v86
  %v199 = vmul.f32 %v188, %v193
  %v200 = vadd.f32 %v198, %v199
  %v201 = vtanh.pop %v200
  %v202 = vmul.f32 %v197, %v201
  %203 = vmatpush.msra.mxu0 %v81
  %204 = vmatpush.msra.mxu0 %v77
  %205 = vmatpush.msra.mxu0 %v73
  %206 = vmatpush.msra.mxu0 %v69
  %207 = vmatpush.msra.mxu0 %v65
  %208 = vmatpush.msra.mxu0 %v61
  %209 = vmatpush.msra.mxu0 %v57
  %210 = vmatpush.msra.mxu0 %v53
  %211 = vmatpush.msra.mxu0 %v49
  %212 = vmatpush.msra.mxu0 %v45
  %213 = vmatpush.msra.mxu0 %v41
  %214 = vmatpush.msra.mxu0 %v37
  %215 = vmatpush.msra.mxu0 %v33
  %216 = vmatpush.msra.mxu0 %v29
  %217 = vmatpush.msra.mxu0 %v25
  %218 = vmatpush.msra.mxu0 %v21
  %219 = vmatmul.f32.gmra.mxu0 %v87
  %v220 = vpop.f32.mrf.mxu0
  %v221 = vadd.f32 0.0, %v220
  %222 = vdwg.mxu0
  %223 = vmatpush.msra.mxu0 %v82
  %224 = vmatpush.msra.mxu0 %v78
  %225 = vmatpush.msra.mxu0 %v74
  %226 = vmatpush.msra.mxu0 %v70
  %227 = vmatpush.msra.mxu0 %v66
  %228 = vmatpush.msra.mxu0 %v62
  %229 = vmatpush.msra.mxu0 %v58
  %230 = vmatpush.msra.mxu0 %v54
  %231 = vmatpush.msra.mxu0 %v50
  %232 = vmatpush.msra.mxu0 %v46
  %233 = vmatpush.msra.mxu0 %v42
  %234 = vmatpush.msra.mxu0 %v38
  %235 = vmatpush.msra.mxu0 %v34
  %236 = vmatpush.msra.mxu0 %v30
  %237 = vmatpush.msra.mxu0 %v26
  %238 = vmatpush.msra.mxu0 %v22
  %239 = vmatmul.f32.gmra.mxu0 %v87
  %v240 = vpop.f32.mrf.mxu0
  %v241 = vadd.f32 0.0, %v240
  %242 = vdwg.mxu0
  %243 = vmatpush.msra.mxu0 %v83
  %244 = vmatpush.msra.mxu0 %v79
  %245 = vmatpush.msra.mxu0 %v75
  %246 = vmatpush.msra.mxu0 %v71
  %247 = vmatpush.msra.mxu0 %v67
  %248 = vmatpush.msra.mxu0 %v63
  %249 = vmatpush.msra.mxu0 %v59
  %250 = vmatpush.msra.mxu0 %v55
  %251 = vmatpush.msra.mxu0 %v51
  %252 = vmatpush.msra.mxu0 %v47
  %253 = vmatpush.msra.mxu0 %v43
  %254 = vmatpush.msra.mxu0 %v39
  %255 = vmatpush.msra.mxu0 %v35
  %256 = vmatpush.msra.mxu0 %v31
  %257 = vmatpush.msra.mxu0 %v27
  %258 = vmatpush.msra.mxu0 %v23
  %259 = vmatmul.f32.gmra.mxu0 %v87
  %v260 = vpop.f32.mrf.mxu0
  %v261 = vadd.f32 0.0, %v260
  %262 = vdwg.mxu0
  %263 = vmatpush.msra.mxu0 %v84
  %264 = vmatpush.msra.mxu0 %v80
  %265 = vmatpush.msra.mxu0 %v76
  %266 = vmatpush.msra.mxu0 %v72
  %267 = vmatpush.msra.mxu0 %v68
  %268 = vmatpush.msra.mxu0 %v64
  %269 = vmatpush.msra.mxu0 %v60
  %270 = vmatpush.msra.mxu0 %v56
  %271 = vmatpush.msra.mxu0 %v52
  %272 = vmatpush.msra.mxu0 %v48
  %273 = vmatpush.msra.mxu0 %v44
  %274 = vmatpush.msra.mxu0 %v40
  %275 = vmatpush.msra.mxu0 %v36
  %276 = vmatpush.msra.mxu0 %v32
  %277 = vmatpush.msra.mxu0 %v28
  %278 = vmatpush.msra.mxu0 %v24
  %279 = vmatmul.f32.gmra.mxu0 %v87
  %v280 = vpop.f32.mrf.mxu0
  %v281 = vadd.f32 0.0, %v280
  %282 = vdwg.mxu0
  %v283 = vadd.f32 %v97, %v221
  %v284 = vadd.f32 %v98, %v241
  %v285 = vadd.f32 %v99, %v261
  %v286 = vadd.f32 %v100, %v281
  %v287 = vmul.f32 %v283, 0.5
  %v288 = vtanh.pop %v287
  %v289 = vmul.f32 %v288, 0.5
  %v290 = vadd.f32 %v289, 0.5
  %v291 = vmul.f32 %v284, 0.5
  %v292 = vtanh.pop %v291
  %v293 = vmul.f32 %v292, 0.5
  %v294 = vadd.f32 %v293, 0.5
  %v295 = vtanh.pop %v285
  %v296 = vmul.f32 %v286, 0.5
  %v297 = vtanh.pop %v296
  %v298 = vmul.f32 %v297, 0.5
  %v299 = vadd.f32 %v298, 0.5
  %v300 = vmul.f32 %v294, %v88
  %v301 = vmul.f32 %v290, %v295
  %v302 = vadd.f32 %v300, %v301
  %v303 = vtanh.pop %v302
  %v304 = vmul.f32 %v299, %v303
  %s305 = scalar_lea.vmem %s0, 32
  %v306 = vld [vmem:[%s305] sm:$0xff]
  %v307 = vld [vmem:[%s305 + $0x8] sm:$0xff]
  %v308 = vld [vmem:[%s305 + $0x10] sm:$0xff]
  %v309 = vld [vmem:[%s305 + $0x18] sm:$0xff]
  %v310 = vunpack.c.l.bf16 %v306
  %v311 = vunpack.c.h.bf16 %v306
  %v312 = vunpack.c.l.bf16 %v307
  %v313 = vunpack.c.h.bf16 %v307
  %v314 = vunpack.c.l.bf16 %v308
  %v315 = vunpack.c.h.bf16 %v308
  %v316 = vunpack.c.l.bf16 %v309
  %v317 = vunpack.c.h.bf16 %v309
  %318 = vmatpush.msra.mxu0 %v81
  %319 = vmatpush.msra.mxu0 %v77
  %320 = vmatpush.msra.mxu0 %v73
  %321 = vmatpush.msra.mxu0 %v69
  %322 = vmatpush.msra.mxu0 %v65
  %323 = vmatpush.msra.mxu0 %v61
  %324 = vmatpush.msra.mxu0 %v57
  %325 = vmatpush.msra.mxu0 %v53
  %326 = vmatpush.msra.mxu0 %v49
  %327 = vmatpush.msra.mxu0 %v45
  %328 = vmatpush.msra.mxu0 %v41
  %329 = vmatpush.msra.mxu0 %v37
  %330 = vmatpush.msra.mxu0 %v33
  %331 = vmatpush.msra.mxu0 %v29
  %332 = vmatpush.msra.mxu0 %v25
  %333 = vmatpush.msra.mxu0 %v21
  %334 = vmatmul.f32.gmra.mxu0 %v202
  %v335 = vpop.f32.mrf.mxu0
  %v336 = vadd.f32 0.0, %v335
  %337 = vdwg.mxu0
  %338 = vmatpush.msra.mxu0 %v82
  %339 = vmatpush.msra.mxu0 %v78
  %340 = vmatpush.msra.mxu0 %v74
  %341 = vmatpush.msra.mxu0 %v70
  %342 = vmatpush.msra.mxu0 %v66
  %343 = vmatpush.msra.mxu0 %v62
  %344 = vmatpush.msra.mxu0 %v58
  %345 = vmatpush.msra.mxu0 %v54
  %346 = vmatpush.msra.mxu0 %v50
  %347 = vmatpush.msra.mxu0 %v46
  %348 = vmatpush.msra.mxu0 %v42
  %349 = vmatpush.msra.mxu0 %v38
  %350 = vmatpush.msra.mxu0 %v34
  %351 = vmatpush.msra.mxu0 %v30
  %352 = vmatpush.msra.mxu0 %v26
  %353 = vmatpush.msra.mxu0 %v22
  %354 = vmatmul.f32.gmra.mxu0 %v202
  %v355 = vpop.f32.mrf.mxu0
  %v356 = vadd.f32 0.0, %v355
  %357 = vdwg.mxu0
  %358 = vmatpush.msra.mxu0 %v83
  %359 = vmatpush.msra.mxu0 %v79
  %360 = vmatpush.msra.mxu0 %v75
  %361 = vmatpush.msra.mxu0 %v71
  %362 = vmatpush.msra.mxu0 %v67
  %363 = vmatpush.msra.mxu0 %v63
  %364 = vmatpush.msra.mxu0 %v59
  %365 = vmatpush.msra.mxu0 %v55
  %366 = vmatpush.msra.mxu0 %v51
  %367 = vmatpush.msra.mxu0 %v47
  %368 = vmatpush.msra.mxu0 %v43
  %369 = vmatpush.msra.mxu0 %v39
  %370 = vmatpush.msra.mxu0 %v35
  %371 = vmatpush.msra.mxu0 %v31
  %372 = vmatpush.msra.mxu0 %v27
  %373 = vmatpush.msra.mxu0 %v23
  %374 = vmatmul.f32.gmra.mxu0 %v202
  %v375 = vpop.f32.mrf.mxu0
  %v376 = vadd.f32 0.0, %v375
  %377 = vdwg.mxu0
  %378 = vmatpush.msra.mxu0 %v84
  %379 = vmatpush.msra.mxu0 %v80
  %380 = vmatpush.msra.mxu0 %v76
  %381 = vmatpush.msra.mxu0 %v72
  %382 = vmatpush.msra.mxu0 %v68
  %383 = vmatpush.msra.mxu0 %v64
  %384 = vmatpush.msra.mxu0 %v60
  %385 = vmatpush.msra.mxu0 %v56
  %386 = vmatpush.msra.mxu0 %v52
  %387 = vmatpush.msra.mxu0 %v48
  %388 = vmatpush.msra.mxu0 %v44
  %389 = vmatpush.msra.mxu0 %v40
  %390 = vmatpush.msra.mxu0 %v36
  %391 = vmatpush.msra.mxu0 %v32
  %392 = vmatpush.msra.mxu0 %v28
  %393 = vmatpush.msra.mxu0 %v24
  %394 = vmatmul.f32.gmra.mxu0 %v202
  %v395 = vpop.f32.mrf.mxu0
  %v396 = vadd.f32 0.0, %v395
  %397 = vdwg.mxu0
  %v398 = vadd.f32 %v310, %v336
  %v399 = vadd.f32 %v311, %v356
  %v400 = vadd.f32 %v312, %v376
  %v401 = vadd.f32 %v313, %v396
  %v402 = vmul.f32 %v398, 0.5
  %v403 = vtanh.pop %v402
  %v404 = vmul.f32 %v403, 0.5
  %v405 = vadd.f32 %v404, 0.5
  %v406 = vmul.f32 %v399, 0.5
  %v407 = vtanh.pop %v406
  %v408 = vmul.f32 %v407, 0.5
  %v409 = vadd.f32 %v408, 0.5
  %v410 = vtanh.pop %v400
  %v411 = vmul.f32 %v401, 0.5
  %v412 = vtanh.pop %v411
  %v413 = vmul.f32 %v412, 0.5
  %v414 = vadd.f32 %v413, 0.5
  %v415 = vmul.f32 %v409, %v200
  %v416 = vmul.f32 %v405, %v410
  %v417 = vadd.f32 %v415, %v416
  %v418 = vtanh.pop %v417
  %v419 = vmul.f32 %v414, %v418
  %420 = vmatpush.msra.mxu0 %v81
  %421 = vmatpush.msra.mxu0 %v77
  %422 = vmatpush.msra.mxu0 %v73
  %423 = vmatpush.msra.mxu0 %v69
  %424 = vmatpush.msra.mxu0 %v65
  %425 = vmatpush.msra.mxu0 %v61
  %426 = vmatpush.msra.mxu0 %v57
  %427 = vmatpush.msra.mxu0 %v53
  %428 = vmatpush.msra.mxu0 %v49
  %429 = vmatpush.msra.mxu0 %v45
  %430 = vmatpush.msra.mxu0 %v41
  %431 = vmatpush.msra.mxu0 %v37
  %432 = vmatpush.msra.mxu0 %v33
  %433 = vmatpush.msra.mxu0 %v29
  %434 = vmatpush.msra.mxu0 %v25
  %435 = vmatpush.msra.mxu0 %v21
  %436 = vmatmul.f32.gmra.mxu0 %v304
  %v437 = vpop.f32.mrf.mxu0
  %v438 = vadd.f32 0.0, %v437
  %439 = vdwg.mxu0
  %440 = vmatpush.msra.mxu0 %v82
  %441 = vmatpush.msra.mxu0 %v78
  %442 = vmatpush.msra.mxu0 %v74
  %443 = vmatpush.msra.mxu0 %v70
  %444 = vmatpush.msra.mxu0 %v66
  %445 = vmatpush.msra.mxu0 %v62
  %446 = vmatpush.msra.mxu0 %v58
  %447 = vmatpush.msra.mxu0 %v54
  %448 = vmatpush.msra.mxu0 %v50
  %449 = vmatpush.msra.mxu0 %v46
  %450 = vmatpush.msra.mxu0 %v42
  %451 = vmatpush.msra.mxu0 %v38
  %452 = vmatpush.msra.mxu0 %v34
  %453 = vmatpush.msra.mxu0 %v30
  %454 = vmatpush.msra.mxu0 %v26
  %455 = vmatpush.msra.mxu0 %v22
  %456 = vmatmul.f32.gmra.mxu0 %v304
  %v457 = vpop.f32.mrf.mxu0
  %v458 = vadd.f32 0.0, %v457
  %459 = vdwg.mxu0
  %460 = vmatpush.msra.mxu0 %v83
  %461 = vmatpush.msra.mxu0 %v79
  %462 = vmatpush.msra.mxu0 %v75
  %463 = vmatpush.msra.mxu0 %v71
  %464 = vmatpush.msra.mxu0 %v67
  %465 = vmatpush.msra.mxu0 %v63
  %466 = vmatpush.msra.mxu0 %v59
  %467 = vmatpush.msra.mxu0 %v55
  %468 = vmatpush.msra.mxu0 %v51
  %469 = vmatpush.msra.mxu0 %v47
  %470 = vmatpush.msra.mxu0 %v43
  %471 = vmatpush.msra.mxu0 %v39
  %472 = vmatpush.msra.mxu0 %v35
  %473 = vmatpush.msra.mxu0 %v31
  %474 = vmatpush.msra.mxu0 %v27
  %475 = vmatpush.msra.mxu0 %v23
  %476 = vmatmul.f32.gmra.mxu0 %v304
  %v477 = vpop.f32.mrf.mxu0
  %v478 = vadd.f32 0.0, %v477
  %479 = vdwg.mxu0
  %480 = vmatpush.msra.mxu0 %v84
  %481 = vmatpush.msra.mxu0 %v80
  %482 = vmatpush.msra.mxu0 %v76
  %483 = vmatpush.msra.mxu0 %v72
  %484 = vmatpush.msra.mxu0 %v68
  %485 = vmatpush.msra.mxu0 %v64
  %486 = vmatpush.msra.mxu0 %v60
  %487 = vmatpush.msra.mxu0 %v56
  %488 = vmatpush.msra.mxu0 %v52
  %489 = vmatpush.msra.mxu0 %v48
  %490 = vmatpush.msra.mxu0 %v44
  %491 = vmatpush.msra.mxu0 %v40
  %492 = vmatpush.msra.mxu0 %v36
  %493 = vmatpush.msra.mxu0 %v32
  %494 = vmatpush.msra.mxu0 %v28
  %495 = vmatpush.msra.mxu0 %v24
  %496 = vmatmul.f32.gmra.mxu0 %v304
  %v497 = vpop.f32.mrf.mxu0
  %v498 = vadd.f32 0.0, %v497
  %499 = vdwg.mxu0
  %v500 = vadd.f32 %v314, %v438
  %v501 = vadd.f32 %v315, %v458
  %v502 = vadd.f32 %v316, %v478
  %v503 = vadd.f32 %v317, %v498
  %v504 = vmul.f32 %v500, 0.5
  %v505 = vtanh.pop %v504
  %v506 = vmul.f32 %v505, 0.5
  %v507 = vadd.f32 %v506, 0.5
  %v508 = vmul.f32 %v501, 0.5
  %v509 = vtanh.pop %v508
  %v510 = vmul.f32 %v509, 0.5
  %v511 = vadd.f32 %v510, 0.5
  %v512 = vtanh.pop %v502
  %v513 = vmul.f32 %v503, 0.5
  %v514 = vtanh.pop %v513
  %v515 = vmul.f32 %v514, 0.5
  %v516 = vadd.f32 %v515, 0.5
  %v517 = vmul.f32 %v511, %v302
  %v518 = vmul.f32 %v507, %v512
  %v519 = vadd.f32 %v517, %v518
  %v520 = vtanh.pop %v519
  %v521 = vmul.f32 %v516, %v520
  %s522 = scalar_lea.vmem %s0, 64
  %v523 = vld [vmem:[%s522] sm:$0xff]
  %v524 = vld [vmem:[%s522 + $0x8] sm:$0xff]
  %v525 = vld [vmem:[%s522 + $0x10] sm:$0xff]
  %v526 = vld [vmem:[%s522 + $0x18] sm:$0xff]
  %v527 = vunpack.c.l.bf16 %v523
  %v528 = vunpack.c.h.bf16 %v523
  %v529 = vunpack.c.l.bf16 %v524
  %v530 = vunpack.c.h.bf16 %v524
  %v531 = vunpack.c.l.bf16 %v525
  %v532 = vunpack.c.h.bf16 %v525
  %v533 = vunpack.c.l.bf16 %v526
  %v534 = vunpack.c.h.bf16 %v526
  %535 = vmatpush.msra.mxu0 %v81
  %536 = vmatpush.msra.mxu0 %v77
  %537 = vmatpush.msra.mxu0 %v73
  %538 = vmatpush.msra.mxu0 %v69
  %539 = vmatpush.msra.mxu0 %v65
  %540 = vmatpush.msra.mxu0 %v61
  %541 = vmatpush.msra.mxu0 %v57
  %542 = vmatpush.msra.mxu0 %v53
  %543 = vmatpush.msra.mxu0 %v49
  %544 = vmatpush.msra.mxu0 %v45
  %545 = vmatpush.msra.mxu0 %v41
  %546 = vmatpush.msra.mxu0 %v37
  %547 = vmatpush.msra.mxu0 %v33
  %548 = vmatpush.msra.mxu0 %v29
  %549 = vmatpush.msra.mxu0 %v25
  %550 = vmatpush.msra.mxu0 %v21
  %551 = vmatmul.f32.gmra.mxu0 %v419
  %v552 = vpop.f32.mrf.mxu0
  %v553 = vadd.f32 0.0, %v552
  %554 = vdwg.mxu0
  %555 = vmatpush.msra.mxu0 %v82
  %556 = vmatpush.msra.mxu0 %v78
  %557 = vmatpush.msra.mxu0 %v74
  %558 = vmatpush.msra.mxu0 %v70
  %559 = vmatpush.msra.mxu0 %v66
  %560 = vmatpush.msra.mxu0 %v62
  %561 = vmatpush.msra.mxu0 %v58
  %562 = vmatpush.msra.mxu0 %v54
  %563 = vmatpush.msra.mxu0 %v50
  %564 = vmatpush.msra.mxu0 %v46
  %565 = vmatpush.msra.mxu0 %v42
  %566 = vmatpush.msra.mxu0 %v38
  %567 = vmatpush.msra.mxu0 %v34
  %568 = vmatpush.msra.mxu0 %v30
  %569 = vmatpush.msra.mxu0 %v26
  %570 = vmatpush.msra.mxu0 %v22
  %571 = vmatmul.f32.gmra.mxu0 %v419
  %v572 = vpop.f32.mrf.mxu0
  %v573 = vadd.f32 0.0, %v572
  %574 = vdwg.mxu0
  %575 = vmatpush.msra.mxu0 %v83
  %576 = vmatpush.msra.mxu0 %v79
  %577 = vmatpush.msra.mxu0 %v75
  %578 = vmatpush.msra.mxu0 %v71
  %579 = vmatpush.msra.mxu0 %v67
  %580 = vmatpush.msra.mxu0 %v63
  %581 = vmatpush.msra.mxu0 %v59
  %582 = vmatpush.msra.mxu0 %v55
  %583 = vmatpush.msra.mxu0 %v51
  %584 = vmatpush.msra.mxu0 %v47
  %585 = vmatpush.msra.mxu0 %v43
  %586 = vmatpush.msra.mxu0 %v39
  %587 = vmatpush.msra.mxu0 %v35
  %588 = vmatpush.msra.mxu0 %v31
  %589 = vmatpush.msra.mxu0 %v27
  %590 = vmatpush.msra.mxu0 %v23
  %591 = vmatmul.f32.gmra.mxu0 %v419
  %v592 = vpop.f32.mrf.mxu0
  %v593 = vadd.f32 0.0, %v592
  %594 = vdwg.mxu0
  %595 = vmatpush.msra.mxu0 %v84
  %596 = vmatpush.msra.mxu0 %v80
  %597 = vmatpush.msra.mxu0 %v76
  %598 = vmatpush.msra.mxu0 %v72
  %599 = vmatpush.msra.mxu0 %v68
  %600 = vmatpush.msra.mxu0 %v64
  %601 = vmatpush.msra.mxu0 %v60
  %602 = vmatpush.msra.mxu0 %v56
  %603 = vmatpush.msra.mxu0 %v52
  %604 = vmatpush.msra.mxu0 %v48
  %605 = vmatpush.msra.mxu0 %v44
  %606 = vmatpush.msra.mxu0 %v40
  %607 = vmatpush.msra.mxu0 %v36
  %608 = vmatpush.msra.mxu0 %v32
  %609 = vmatpush.msra.mxu0 %v28
  %610 = vmatpush.msra.mxu0 %v24
  %611 = vmatmul.f32.gmra.mxu0 %v419
  %v612 = vpop.f32.mrf.mxu0
  %v613 = vadd.f32 0.0, %v612
  %614 = vdwg.mxu0
  %v615 = vadd.f32 %v527, %v553
  %v616 = vadd.f32 %v528, %v573
  %v617 = vadd.f32 %v529, %v593
  %v618 = vadd.f32 %v530, %v613
  %v619 = vmul.f32 %v615, 0.5
  %v620 = vtanh.pop %v619
  %v621 = vmul.f32 %v620, 0.5
  %v622 = vadd.f32 %v621, 0.5
  %v623 = vmul.f32 %v616, 0.5
  %v624 = vtanh.pop %v623
  %v625 = vmul.f32 %v624, 0.5
  %v626 = vadd.f32 %v625, 0.5
  %v627 = vtanh.pop %v617
  %v628 = vmul.f32 %v618, 0.5
  %v629 = vtanh.pop %v628
  %v630 = vmul.f32 %v629, 0.5
  %v631 = vadd.f32 %v630, 0.5
  %v632 = vmul.f32 %v626, %v417
  %v633 = vmul.f32 %v622, %v627
  %v634 = vadd.f32 %v632, %v633
  %v635 = vtanh.pop %v634
  %v636 = vmul.f32 %v631, %v635
  %637 = vmatpush.msra.mxu0 %v81
  %638 = vmatpush.msra.mxu0 %v77
  %639 = vmatpush.msra.mxu0 %v73
  %640 = vmatpush.msra.mxu0 %v69
  %641 = vmatpush.msra.mxu0 %v65
  %642 = vmatpush.msra.mxu0 %v61
  %643 = vmatpush.msra.mxu0 %v57
  %644 = vmatpush.msra.mxu0 %v53
  %645 = vmatpush.msra.mxu0 %v49
  %646 = vmatpush.msra.mxu0 %v45
  %647 = vmatpush.msra.mxu0 %v41
  %648 = vmatpush.msra.mxu0 %v37
  %649 = vmatpush.msra.mxu0 %v33
  %650 = vmatpush.msra.mxu0 %v29
  %651 = vmatpush.msra.mxu0 %v25
  %652 = vmatpush.msra.mxu0 %v21
  %653 = vmatmul.f32.gmra.mxu0 %v521
  %v654 = vpop.f32.mrf.mxu0
  %v655 = vadd.f32 0.0, %v654
  %656 = vdwg.mxu0
  %657 = vmatpush.msra.mxu0 %v82
  %658 = vmatpush.msra.mxu0 %v78
  %659 = vmatpush.msra.mxu0 %v74
  %660 = vmatpush.msra.mxu0 %v70
  %661 = vmatpush.msra.mxu0 %v66
  %662 = vmatpush.msra.mxu0 %v62
  %663 = vmatpush.msra.mxu0 %v58
  %664 = vmatpush.msra.mxu0 %v54
  %665 = vmatpush.msra.mxu0 %v50
  %666 = vmatpush.msra.mxu0 %v46
  %667 = vmatpush.msra.mxu0 %v42
  %668 = vmatpush.msra.mxu0 %v38
  %669 = vmatpush.msra.mxu0 %v34
  %670 = vmatpush.msra.mxu0 %v30
  %671 = vmatpush.msra.mxu0 %v26
  %672 = vmatpush.msra.mxu0 %v22
  %673 = vmatmul.f32.gmra.mxu0 %v521
  %v674 = vpop.f32.mrf.mxu0
  %v675 = vadd.f32 0.0, %v674
  %676 = vdwg.mxu0
  %677 = vmatpush.msra.mxu0 %v83
  %678 = vmatpush.msra.mxu0 %v79
  %679 = vmatpush.msra.mxu0 %v75
  %680 = vmatpush.msra.mxu0 %v71
  %681 = vmatpush.msra.mxu0 %v67
  %682 = vmatpush.msra.mxu0 %v63
  %683 = vmatpush.msra.mxu0 %v59
  %684 = vmatpush.msra.mxu0 %v55
  %685 = vmatpush.msra.mxu0 %v51
  %686 = vmatpush.msra.mxu0 %v47
  %687 = vmatpush.msra.mxu0 %v43
  %688 = vmatpush.msra.mxu0 %v39
  %689 = vmatpush.msra.mxu0 %v35
  %690 = vmatpush.msra.mxu0 %v31
  %691 = vmatpush.msra.mxu0 %v27
  %692 = vmatpush.msra.mxu0 %v23
  %693 = vmatmul.f32.gmra.mxu0 %v521
  %v694 = vpop.f32.mrf.mxu0
  %v695 = vadd.f32 0.0, %v694
  %696 = vdwg.mxu0
  %697 = vmatpush.msra.mxu0 %v84
  %698 = vmatpush.msra.mxu0 %v80
  %699 = vmatpush.msra.mxu0 %v76
  %700 = vmatpush.msra.mxu0 %v72
  %701 = vmatpush.msra.mxu0 %v68
  %702 = vmatpush.msra.mxu0 %v64
  %703 = vmatpush.msra.mxu0 %v60
  %704 = vmatpush.msra.mxu0 %v56
  %705 = vmatpush.msra.mxu0 %v52
  %706 = vmatpush.msra.mxu0 %v48
  %707 = vmatpush.msra.mxu0 %v44
  %708 = vmatpush.msra.mxu0 %v40
  %709 = vmatpush.msra.mxu0 %v36
  %710 = vmatpush.msra.mxu0 %v32
  %711 = vmatpush.msra.mxu0 %v28
  %712 = vmatpush.msra.mxu0 %v24
  %713 = vmatmul.f32.gmra.mxu0 %v521
  %v714 = vpop.f32.mrf.mxu0
  %v715 = vadd.f32 0.0, %v714
  %716 = vdwg.mxu0
  %v717 = vadd.f32 %v531, %v655
  %v718 = vadd.f32 %v532, %v675
  %v719 = vadd.f32 %v533, %v695
  %v720 = vadd.f32 %v534, %v715
  %v721 = vmul.f32 %v717, 0.5
  %v722 = vtanh.pop %v721
  %v723 = vmul.f32 %v722, 0.5
  %v724 = vadd.f32 %v723, 0.5
  %v725 = vmul.f32 %v718, 0.5
  %v726 = vtanh.pop %v725
  %v727 = vmul.f32 %v726, 0.5
  %v728 = vadd.f32 %v727, 0.5
  %v729 = vtanh.pop %v719
  %v730 = vmul.f32 %v720, 0.5
  %v731 = vtanh.pop %v730
  %v732 = vmul.f32 %v731, 0.5
  %v733 = vadd.f32 %v732, 0.5
  %v734 = vmul.f32 %v728, %v519
  %v735 = vmul.f32 %v724, %v729
  %v736 = vadd.f32 %v734, %v735
  %v737 = vtanh.pop %v736
  %v738 = vmul.f32 %v733, %v737
  %s739 = scalar_lea.vmem %s0, 96
  %v740 = vld [vmem:[%s739] sm:$0xff]
  %v741 = vld [vmem:[%s739 + $0x8] sm:$0xff]
  %v742 = vld [vmem:[%s739 + $0x10] sm:$0xff]
  %v743 = vld [vmem:[%s739 + $0x18] sm:$0xff]
  %v744 = vunpack.c.l.bf16 %v740
  %v745 = vunpack.c.h.bf16 %v740
  %v746 = vunpack.c.l.bf16 %v741
  %v747 = vunpack.c.h.bf16 %v741
  %v748 = vunpack.c.l.bf16 %v742
  %v749 = vunpack.c.h.bf16 %v742
  %v750 = vunpack.c.l.bf16 %v743
  %v751 = vunpack.c.h.bf16 %v743
  %752 = vmatpush.msra.mxu0 %v81
  %753 = vmatpush.msra.mxu0 %v77
  %754 = vmatpush.msra.mxu0 %v73
  %755 = vmatpush.msra.mxu0 %v69
  %756 = vmatpush.msra.mxu0 %v65
  %757 = vmatpush.msra.mxu0 %v61
  %758 = vmatpush.msra.mxu0 %v57
  %759 = vmatpush.msra.mxu0 %v53
  %760 = vmatpush.msra.mxu0 %v49
  %761 = vmatpush.msra.mxu0 %v45
  %762 = vmatpush.msra.mxu0 %v41
  %763 = vmatpush.msra.mxu0 %v37
  %764 = vmatpush.msra.mxu0 %v33
  %765 = vmatpush.msra.mxu0 %v29
  %766 = vmatpush.msra.mxu0 %v25
  %767 = vmatpush.msra.mxu0 %v21
  %768 = vmatmul.f32.gmra.mxu0 %v636
  %v769 = vpop.f32.mrf.mxu0
  %v770 = vadd.f32 0.0, %v769
  %771 = vdwg.mxu0
  %772 = vmatpush.msra.mxu0 %v82
  %773 = vmatpush.msra.mxu0 %v78
  %774 = vmatpush.msra.mxu0 %v74
  %775 = vmatpush.msra.mxu0 %v70
  %776 = vmatpush.msra.mxu0 %v66
  %777 = vmatpush.msra.mxu0 %v62
  %778 = vmatpush.msra.mxu0 %v58
  %779 = vmatpush.msra.mxu0 %v54
  %780 = vmatpush.msra.mxu0 %v50
  %781 = vmatpush.msra.mxu0 %v46
  %782 = vmatpush.msra.mxu0 %v42
  %783 = vmatpush.msra.mxu0 %v38
  %784 = vmatpush.msra.mxu0 %v34
  %785 = vmatpush.msra.mxu0 %v30
  %786 = vmatpush.msra.mxu0 %v26
  %787 = vmatpush.msra.mxu0 %v22
  %788 = vmatmul.f32.gmra.mxu0 %v636
  %v789 = vpop.f32.mrf.mxu0
  %v790 = vadd.f32 0.0, %v789
  %791 = vdwg.mxu0
  %792 = vmatpush.msra.mxu0 %v83
  %793 = vmatpush.msra.mxu0 %v79
  %794 = vmatpush.msra.mxu0 %v75
  %795 = vmatpush.msra.mxu0 %v71
  %796 = vmatpush.msra.mxu0 %v67
  %797 = vmatpush.msra.mxu0 %v63
  %798 = vmatpush.msra.mxu0 %v59
  %799 = vmatpush.msra.mxu0 %v55
  %800 = vmatpush.msra.mxu0 %v51
  %801 = vmatpush.msra.mxu0 %v47
  %802 = vmatpush.msra.mxu0 %v43
  %803 = vmatpush.msra.mxu0 %v39
  %804 = vmatpush.msra.mxu0 %v35
  %805 = vmatpush.msra.mxu0 %v31
  %806 = vmatpush.msra.mxu0 %v27
  %807 = vmatpush.msra.mxu0 %v23
  %808 = vmatmul.f32.gmra.mxu0 %v636
  %v809 = vpop.f32.mrf.mxu0
  %v810 = vadd.f32 0.0, %v809
  %811 = vdwg.mxu0
  %812 = vmatpush.msra.mxu0 %v84
  %813 = vmatpush.msra.mxu0 %v80
  %814 = vmatpush.msra.mxu0 %v76
  %815 = vmatpush.msra.mxu0 %v72
  %816 = vmatpush.msra.mxu0 %v68
  %817 = vmatpush.msra.mxu0 %v64
  %818 = vmatpush.msra.mxu0 %v60
  %819 = vmatpush.msra.mxu0 %v56
  %820 = vmatpush.msra.mxu0 %v52
  %821 = vmatpush.msra.mxu0 %v48
  %822 = vmatpush.msra.mxu0 %v44
  %823 = vmatpush.msra.mxu0 %v40
  %824 = vmatpush.msra.mxu0 %v36
  %825 = vmatpush.msra.mxu0 %v32
  %826 = vmatpush.msra.mxu0 %v28
  %827 = vmatpush.msra.mxu0 %v24
  %828 = vmatmul.f32.gmra.mxu0 %v636
  %v829 = vpop.f32.mrf.mxu0
  %v830 = vadd.f32 0.0, %v829
  %831 = vdwg.mxu0
  %v832 = vadd.f32 %v744, %v770
  %v833 = vadd.f32 %v745, %v790
  %v834 = vadd.f32 %v746, %v810
  %v835 = vadd.f32 %v747, %v830
  %v836 = vmul.f32 %v832, 0.5
  %v837 = vtanh.pop %v836
  %v838 = vmul.f32 %v837, 0.5
  %v839 = vadd.f32 %v838, 0.5
  %v840 = vmul.f32 %v833, 0.5
  %v841 = vtanh.pop %v840
  %v842 = vmul.f32 %v841, 0.5
  %v843 = vadd.f32 %v842, 0.5
  %v844 = vtanh.pop %v834
  %v845 = vmul.f32 %v835, 0.5
  %v846 = vtanh.pop %v845
  %v847 = vmul.f32 %v846, 0.5
  %v848 = vadd.f32 %v847, 0.5
  %v849 = vmul.f32 %v843, %v634
  %v850 = vmul.f32 %v839, %v844
  %v851 = vadd.f32 %v849, %v850
  %v852 = vtanh.pop %v851
  %v853 = vmul.f32 %v848, %v852
  %854 = vmatpush.msra.mxu0 %v81
  %855 = vmatpush.msra.mxu0 %v77
  %856 = vmatpush.msra.mxu0 %v73
  %857 = vmatpush.msra.mxu0 %v69
  %858 = vmatpush.msra.mxu0 %v65
  %859 = vmatpush.msra.mxu0 %v61
  %860 = vmatpush.msra.mxu0 %v57
  %861 = vmatpush.msra.mxu0 %v53
  %862 = vmatpush.msra.mxu0 %v49
  %863 = vmatpush.msra.mxu0 %v45
  %864 = vmatpush.msra.mxu0 %v41
  %865 = vmatpush.msra.mxu0 %v37
  %866 = vmatpush.msra.mxu0 %v33
  %867 = vmatpush.msra.mxu0 %v29
  %868 = vmatpush.msra.mxu0 %v25
  %869 = vmatpush.msra.mxu0 %v21
  %870 = vmatmul.f32.gmra.mxu0 %v738
  %v871 = vpop.f32.mrf.mxu0
  %v872 = vadd.f32 0.0, %v871
  %873 = vdwg.mxu0
  %874 = vmatpush.msra.mxu0 %v82
  %875 = vmatpush.msra.mxu0 %v78
  %876 = vmatpush.msra.mxu0 %v74
  %877 = vmatpush.msra.mxu0 %v70
  %878 = vmatpush.msra.mxu0 %v66
  %879 = vmatpush.msra.mxu0 %v62
  %880 = vmatpush.msra.mxu0 %v58
  %881 = vmatpush.msra.mxu0 %v54
  %882 = vmatpush.msra.mxu0 %v50
  %883 = vmatpush.msra.mxu0 %v46
  %884 = vmatpush.msra.mxu0 %v42
  %885 = vmatpush.msra.mxu0 %v38
  %886 = vmatpush.msra.mxu0 %v34
  %887 = vmatpush.msra.mxu0 %v30
  %888 = vmatpush.msra.mxu0 %v26
  %889 = vmatpush.msra.mxu0 %v22
  %890 = vmatmul.f32.gmra.mxu0 %v738
  %v891 = vpop.f32.mrf.mxu0
  %v892 = vadd.f32 0.0, %v891
  %893 = vdwg.mxu0
  %894 = vmatpush.msra.mxu0 %v83
  %895 = vmatpush.msra.mxu0 %v79
  %896 = vmatpush.msra.mxu0 %v75
  %897 = vmatpush.msra.mxu0 %v71
  %898 = vmatpush.msra.mxu0 %v67
  %899 = vmatpush.msra.mxu0 %v63
  %900 = vmatpush.msra.mxu0 %v59
  %901 = vmatpush.msra.mxu0 %v55
  %902 = vmatpush.msra.mxu0 %v51
  %903 = vmatpush.msra.mxu0 %v47
  %904 = vmatpush.msra.mxu0 %v43
  %905 = vmatpush.msra.mxu0 %v39
  %906 = vmatpush.msra.mxu0 %v35
  %907 = vmatpush.msra.mxu0 %v31
  %908 = vmatpush.msra.mxu0 %v27
  %909 = vmatpush.msra.mxu0 %v23
  %910 = vmatmul.f32.gmra.mxu0 %v738
  %v911 = vpop.f32.mrf.mxu0
  %v912 = vadd.f32 0.0, %v911
  %913 = vdwg.mxu0
  %914 = vmatpush.msra.mxu0 %v84
  %915 = vmatpush.msra.mxu0 %v80
  %916 = vmatpush.msra.mxu0 %v76
  %917 = vmatpush.msra.mxu0 %v72
  %918 = vmatpush.msra.mxu0 %v68
  %919 = vmatpush.msra.mxu0 %v64
  %920 = vmatpush.msra.mxu0 %v60
  %921 = vmatpush.msra.mxu0 %v56
  %922 = vmatpush.msra.mxu0 %v52
  %923 = vmatpush.msra.mxu0 %v48
  %924 = vmatpush.msra.mxu0 %v44
  %925 = vmatpush.msra.mxu0 %v40
  %926 = vmatpush.msra.mxu0 %v36
  %927 = vmatpush.msra.mxu0 %v32
  %928 = vmatpush.msra.mxu0 %v28
  %929 = vmatpush.msra.mxu0 %v24
  %930 = vmatmul.f32.gmra.mxu0 %v738
  %v931 = vpop.f32.mrf.mxu0
  %v932 = vadd.f32 0.0, %v931
  %933 = vdwg.mxu0
  %v934 = vadd.f32 %v748, %v872
  %v935 = vadd.f32 %v749, %v892
  %v936 = vadd.f32 %v750, %v912
  %v937 = vadd.f32 %v751, %v932
  %v938 = vmul.f32 %v934, 0.5
  %v939 = vtanh.pop %v938
  %v940 = vmul.f32 %v939, 0.5
  %v941 = vadd.f32 %v940, 0.5
  %v942 = vmul.f32 %v935, 0.5
  %v943 = vtanh.pop %v942
  %v944 = vmul.f32 %v943, 0.5
  %v945 = vadd.f32 %v944, 0.5
  %v946 = vtanh.pop %v936
  %v947 = vmul.f32 %v937, 0.5
  %v948 = vtanh.pop %v947
  %v949 = vmul.f32 %v948, 0.5
  %v950 = vadd.f32 %v949, 0.5
  %v951 = vmul.f32 %v945, %v736
  %v952 = vmul.f32 %v941, %v946
  %v953 = vadd.f32 %v951, %v952
  %v954 = vtanh.pop %v953
  %v955 = vmul.f32 %v950, %v954
  %s956 = scalar_lea.vmem %s0, 128
  %v957 = vld [vmem:[%s956] sm:$0xff]
  %v958 = vld [vmem:[%s956 + $0x8] sm:$0xff]
  %v959 = vld [vmem:[%s956 + $0x10] sm:$0xff]
  %v960 = vld [vmem:[%s956 + $0x18] sm:$0xff]
  %v961 = vunpack.c.l.bf16 %v957
  %v962 = vunpack.c.h.bf16 %v957
  %v963 = vunpack.c.l.bf16 %v958
  %v964 = vunpack.c.h.bf16 %v958
  %v965 = vunpack.c.l.bf16 %v959
  %v966 = vunpack.c.h.bf16 %v959
  %v967 = vunpack.c.l.bf16 %v960
  %v968 = vunpack.c.h.bf16 %v960
  %969 = vmatpush.msra.mxu0 %v81
  %970 = vmatpush.msra.mxu0 %v77
  %971 = vmatpush.msra.mxu0 %v73
  %972 = vmatpush.msra.mxu0 %v69
  %973 = vmatpush.msra.mxu0 %v65
  %974 = vmatpush.msra.mxu0 %v61
  %975 = vmatpush.msra.mxu0 %v57
  %976 = vmatpush.msra.mxu0 %v53
  %977 = vmatpush.msra.mxu0 %v49
  %978 = vmatpush.msra.mxu0 %v45
  %979 = vmatpush.msra.mxu0 %v41
  %980 = vmatpush.msra.mxu0 %v37
  %981 = vmatpush.msra.mxu0 %v33
  %982 = vmatpush.msra.mxu0 %v29
  %983 = vmatpush.msra.mxu0 %v25
  %984 = vmatpush.msra.mxu0 %v21
  %985 = vmatmul.f32.gmra.mxu0 %v853
  %v986 = vpop.f32.mrf.mxu0
  %v987 = vadd.f32 0.0, %v986
  %988 = vdwg.mxu0
  %989 = vmatpush.msra.mxu0 %v82
  %990 = vmatpush.msra.mxu0 %v78
  %991 = vmatpush.msra.mxu0 %v74
  %992 = vmatpush.msra.mxu0 %v70
  %993 = vmatpush.msra.mxu0 %v66
  %994 = vmatpush.msra.mxu0 %v62
  %995 = vmatpush.msra.mxu0 %v58
  %996 = vmatpush.msra.mxu0 %v54
  %997 = vmatpush.msra.mxu0 %v50
  %998 = vmatpush.msra.mxu0 %v46
  %999 = vmatpush.msra.mxu0 %v42
  %1000 = vmatpush.msra.mxu0 %v38
  %1001 = vmatpush.msra.mxu0 %v34
  %1002 = vmatpush.msra.mxu0 %v30
  %1003 = vmatpush.msra.mxu0 %v26
  %1004 = vmatpush.msra.mxu0 %v22
  %1005 = vmatmul.f32.gmra.mxu0 %v853
  %v1006 = vpop.f32.mrf.mxu0
  %v1007 = vadd.f32 0.0, %v1006
  %1008 = vdwg.mxu0
  %1009 = vmatpush.msra.mxu0 %v83
  %1010 = vmatpush.msra.mxu0 %v79
  %1011 = vmatpush.msra.mxu0 %v75
  %1012 = vmatpush.msra.mxu0 %v71
  %1013 = vmatpush.msra.mxu0 %v67
  %1014 = vmatpush.msra.mxu0 %v63
  %1015 = vmatpush.msra.mxu0 %v59
  %1016 = vmatpush.msra.mxu0 %v55
  %1017 = vmatpush.msra.mxu0 %v51
  %1018 = vmatpush.msra.mxu0 %v47
  %1019 = vmatpush.msra.mxu0 %v43
  %1020 = vmatpush.msra.mxu0 %v39
  %1021 = vmatpush.msra.mxu0 %v35
  %1022 = vmatpush.msra.mxu0 %v31
  %1023 = vmatpush.msra.mxu0 %v27
  %1024 = vmatpush.msra.mxu0 %v23
  %1025 = vmatmul.f32.gmra.mxu0 %v853
  %v1026 = vpop.f32.mrf.mxu0
  %v1027 = vadd.f32 0.0, %v1026
  %1028 = vdwg.mxu0
  %1029 = vmatpush.msra.mxu0 %v84
  %1030 = vmatpush.msra.mxu0 %v80
  %1031 = vmatpush.msra.mxu0 %v76
  %1032 = vmatpush.msra.mxu0 %v72
  %1033 = vmatpush.msra.mxu0 %v68
  %1034 = vmatpush.msra.mxu0 %v64
  %1035 = vmatpush.msra.mxu0 %v60
  %1036 = vmatpush.msra.mxu0 %v56
  %1037 = vmatpush.msra.mxu0 %v52
  %1038 = vmatpush.msra.mxu0 %v48
  %1039 = vmatpush.msra.mxu0 %v44
  %1040 = vmatpush.msra.mxu0 %v40
  %1041 = vmatpush.msra.mxu0 %v36
  %1042 = vmatpush.msra.mxu0 %v32
  %1043 = vmatpush.msra.mxu0 %v28
  %1044 = vmatpush.msra.mxu0 %v24
  %1045 = vmatmul.f32.gmra.mxu0 %v853
  %v1046 = vpop.f32.mrf.mxu0
  %v1047 = vadd.f32 0.0, %v1046
  %1048 = vdwg.mxu0
  %v1049 = vadd.f32 %v961, %v987
  %v1050 = vadd.f32 %v962, %v1007
  %v1051 = vadd.f32 %v963, %v1027
  %v1052 = vadd.f32 %v964, %v1047
  %v1053 = vmul.f32 %v1049, 0.5
  %v1054 = vtanh.pop %v1053
  %v1055 = vmul.f32 %v1054, 0.5
  %v1056 = vadd.f32 %v1055, 0.5
  %v1057 = vmul.f32 %v1050, 0.5
  %v1058 = vtanh.pop %v1057
  %v1059 = vmul.f32 %v1058, 0.5
  %v1060 = vadd.f32 %v1059, 0.5
  %v1061 = vtanh.pop %v1051
  %v1062 = vmul.f32 %v1052, 0.5
  %v1063 = vtanh.pop %v1062
  %v1064 = vmul.f32 %v1063, 0.5
  %v1065 = vadd.f32 %v1064, 0.5
  %v1066 = vmul.f32 %v1060, %v851
  %v1067 = vmul.f32 %v1056, %v1061
  %v1068 = vadd.f32 %v1066, %v1067
  %v1069 = vtanh.pop %v1068
  %v1070 = vmul.f32 %v1065, %v1069
  %1071 = vmatpush.msra.mxu0 %v81
  %1072 = vmatpush.msra.mxu0 %v77
  %1073 = vmatpush.msra.mxu0 %v73
  %1074 = vmatpush.msra.mxu0 %v69
  %1075 = vmatpush.msra.mxu0 %v65
  %1076 = vmatpush.msra.mxu0 %v61
  %1077 = vmatpush.msra.mxu0 %v57
  %1078 = vmatpush.msra.mxu0 %v53
  %1079 = vmatpush.msra.mxu0 %v49
  %1080 = vmatpush.msra.mxu0 %v45
  %1081 = vmatpush.msra.mxu0 %v41
  %1082 = vmatpush.msra.mxu0 %v37
  %1083 = vmatpush.msra.mxu0 %v33
  %1084 = vmatpush.msra.mxu0 %v29
  %1085 = vmatpush.msra.mxu0 %v25
  %1086 = vmatpush.msra.mxu0 %v21
  %1087 = vmatmul.f32.gmra.mxu0 %v955
  %v1088 = vpop.f32.mrf.mxu0
  %v1089 = vadd.f32 0.0, %v1088
  %1090 = vdwg.mxu0
  %1091 = vmatpush.msra.mxu0 %v82
  %1092 = vmatpush.msra.mxu0 %v78
  %1093 = vmatpush.msra.mxu0 %v74
  %1094 = vmatpush.msra.mxu0 %v70
  %1095 = vmatpush.msra.mxu0 %v66
  %1096 = vmatpush.msra.mxu0 %v62
  %1097 = vmatpush.msra.mxu0 %v58
  %1098 = vmatpush.msra.mxu0 %v54
  %1099 = vmatpush.msra.mxu0 %v50
  %1100 = vmatpush.msra.mxu0 %v46
  %1101 = vmatpush.msra.mxu0 %v42
  %1102 = vmatpush.msra.mxu0 %v38
  %1103 = vmatpush.msra.mxu0 %v34
  %1104 = vmatpush.msra.mxu0 %v30
  %1105 = vmatpush.msra.mxu0 %v26
  %1106 = vmatpush.msra.mxu0 %v22
  %1107 = vmatmul.f32.gmra.mxu0 %v955
  %v1108 = vpop.f32.mrf.mxu0
  %v1109 = vadd.f32 0.0, %v1108
  %1110 = vdwg.mxu0
  %1111 = vmatpush.msra.mxu0 %v83
  %1112 = vmatpush.msra.mxu0 %v79
  %1113 = vmatpush.msra.mxu0 %v75
  %1114 = vmatpush.msra.mxu0 %v71
  %1115 = vmatpush.msra.mxu0 %v67
  %1116 = vmatpush.msra.mxu0 %v63
  %1117 = vmatpush.msra.mxu0 %v59
  %1118 = vmatpush.msra.mxu0 %v55
  %1119 = vmatpush.msra.mxu0 %v51
  %1120 = vmatpush.msra.mxu0 %v47
  %1121 = vmatpush.msra.mxu0 %v43
  %1122 = vmatpush.msra.mxu0 %v39
  %1123 = vmatpush.msra.mxu0 %v35
  %1124 = vmatpush.msra.mxu0 %v31
  %1125 = vmatpush.msra.mxu0 %v27
  %1126 = vmatpush.msra.mxu0 %v23
  %1127 = vmatmul.f32.gmra.mxu0 %v955
  %v1128 = vpop.f32.mrf.mxu0
  %v1129 = vadd.f32 0.0, %v1128
  %1130 = vdwg.mxu0
  %1131 = vmatpush.msra.mxu0 %v84
  %1132 = vmatpush.msra.mxu0 %v80
  %1133 = vmatpush.msra.mxu0 %v76
  %1134 = vmatpush.msra.mxu0 %v72
  %1135 = vmatpush.msra.mxu0 %v68
  %1136 = vmatpush.msra.mxu0 %v64
  %1137 = vmatpush.msra.mxu0 %v60
  %1138 = vmatpush.msra.mxu0 %v56
  %1139 = vmatpush.msra.mxu0 %v52
  %1140 = vmatpush.msra.mxu0 %v48
  %1141 = vmatpush.msra.mxu0 %v44
  %1142 = vmatpush.msra.mxu0 %v40
  %1143 = vmatpush.msra.mxu0 %v36
  %1144 = vmatpush.msra.mxu0 %v32
  %1145 = vmatpush.msra.mxu0 %v28
  %1146 = vmatpush.msra.mxu0 %v24
  %1147 = vmatmul.f32.gmra.mxu0 %v955
  %v1148 = vpop.f32.mrf.mxu0
  %v1149 = vadd.f32 0.0, %v1148
  %1150 = vdwg.mxu0
  %v1151 = vadd.f32 %v965, %v1089
  %v1152 = vadd.f32 %v966, %v1109
  %v1153 = vadd.f32 %v967, %v1129
  %v1154 = vadd.f32 %v968, %v1149
  %v1155 = vmul.f32 %v1151, 0.5
  %v1156 = vtanh.pop %v1155
  %v1157 = vmul.f32 %v1156, 0.5
  %v1158 = vadd.f32 %v1157, 0.5
  %v1159 = vmul.f32 %v1152, 0.5
  %v1160 = vtanh.pop %v1159
  %v1161 = vmul.f32 %v1160, 0.5
  %v1162 = vadd.f32 %v1161, 0.5
  %v1163 = vtanh.pop %v1153
  %v1164 = vmul.f32 %v1154, 0.5
  %v1165 = vtanh.pop %v1164
  %v1166 = vmul.f32 %v1165, 0.5
  %v1167 = vadd.f32 %v1166, 0.5
  %v1168 = vmul.f32 %v1162, %v953
  %v1169 = vmul.f32 %v1158, %v1163
  %v1170 = vadd.f32 %v1168, %v1169
  %v1171 = vtanh.pop %v1170
  %v1172 = vmul.f32 %v1167, %v1171
  %s1173 = scalar_lea.vmem %s0, 160
  %v1174 = vld [vmem:[%s1173] sm:$0xff]
  %v1175 = vld [vmem:[%s1173 + $0x8] sm:$0xff]
  %v1176 = vld [vmem:[%s1173 + $0x10] sm:$0xff]
  %v1177 = vld [vmem:[%s1173 + $0x18] sm:$0xff]
  %v1178 = vunpack.c.l.bf16 %v1174
  %v1179 = vunpack.c.h.bf16 %v1174
  %v1180 = vunpack.c.l.bf16 %v1175
  %v1181 = vunpack.c.h.bf16 %v1175
  %v1182 = vunpack.c.l.bf16 %v1176
  %v1183 = vunpack.c.h.bf16 %v1176
  %v1184 = vunpack.c.l.bf16 %v1177
  %v1185 = vunpack.c.h.bf16 %v1177
  %1186 = vmatpush.msra.mxu0 %v81
  %1187 = vmatpush.msra.mxu0 %v77
  %1188 = vmatpush.msra.mxu0 %v73
  %1189 = vmatpush.msra.mxu0 %v69
  %1190 = vmatpush.msra.mxu0 %v65
  %1191 = vmatpush.msra.mxu0 %v61
  %1192 = vmatpush.msra.mxu0 %v57
  %1193 = vmatpush.msra.mxu0 %v53
  %1194 = vmatpush.msra.mxu0 %v49
  %1195 = vmatpush.msra.mxu0 %v45
  %1196 = vmatpush.msra.mxu0 %v41
  %1197 = vmatpush.msra.mxu0 %v37
  %1198 = vmatpush.msra.mxu0 %v33
  %1199 = vmatpush.msra.mxu0 %v29
  %1200 = vmatpush.msra.mxu0 %v25
  %1201 = vmatpush.msra.mxu0 %v21
  %1202 = vmatmul.f32.gmra.mxu0 %v1070
  %v1203 = vpop.f32.mrf.mxu0
  %v1204 = vadd.f32 0.0, %v1203
  %1205 = vdwg.mxu0
  %1206 = vmatpush.msra.mxu0 %v82
  %1207 = vmatpush.msra.mxu0 %v78
  %1208 = vmatpush.msra.mxu0 %v74
  %1209 = vmatpush.msra.mxu0 %v70
  %1210 = vmatpush.msra.mxu0 %v66
  %1211 = vmatpush.msra.mxu0 %v62
  %1212 = vmatpush.msra.mxu0 %v58
  %1213 = vmatpush.msra.mxu0 %v54
  %1214 = vmatpush.msra.mxu0 %v50
  %1215 = vmatpush.msra.mxu0 %v46
  %1216 = vmatpush.msra.mxu0 %v42
  %1217 = vmatpush.msra.mxu0 %v38
  %1218 = vmatpush.msra.mxu0 %v34
  %1219 = vmatpush.msra.mxu0 %v30
  %1220 = vmatpush.msra.mxu0 %v26
  %1221 = vmatpush.msra.mxu0 %v22
  %1222 = vmatmul.f32.gmra.mxu0 %v1070
  %v1223 = vpop.f32.mrf.mxu0
  %v1224 = vadd.f32 0.0, %v1223
  %1225 = vdwg.mxu0
  %1226 = vmatpush.msra.mxu0 %v83
  %1227 = vmatpush.msra.mxu0 %v79
  %1228 = vmatpush.msra.mxu0 %v75
  %1229 = vmatpush.msra.mxu0 %v71
  %1230 = vmatpush.msra.mxu0 %v67
  %1231 = vmatpush.msra.mxu0 %v63
  %1232 = vmatpush.msra.mxu0 %v59
  %1233 = vmatpush.msra.mxu0 %v55
  %1234 = vmatpush.msra.mxu0 %v51
  %1235 = vmatpush.msra.mxu0 %v47
  %1236 = vmatpush.msra.mxu0 %v43
  %1237 = vmatpush.msra.mxu0 %v39
  %1238 = vmatpush.msra.mxu0 %v35
  %1239 = vmatpush.msra.mxu0 %v31
  %1240 = vmatpush.msra.mxu0 %v27
  %1241 = vmatpush.msra.mxu0 %v23
  %1242 = vmatmul.f32.gmra.mxu0 %v1070
  %v1243 = vpop.f32.mrf.mxu0
  %v1244 = vadd.f32 0.0, %v1243
  %1245 = vdwg.mxu0
  %1246 = vmatpush.msra.mxu0 %v84
  %1247 = vmatpush.msra.mxu0 %v80
  %1248 = vmatpush.msra.mxu0 %v76
  %1249 = vmatpush.msra.mxu0 %v72
  %1250 = vmatpush.msra.mxu0 %v68
  %1251 = vmatpush.msra.mxu0 %v64
  %1252 = vmatpush.msra.mxu0 %v60
  %1253 = vmatpush.msra.mxu0 %v56
  %1254 = vmatpush.msra.mxu0 %v52
  %1255 = vmatpush.msra.mxu0 %v48
  %1256 = vmatpush.msra.mxu0 %v44
  %1257 = vmatpush.msra.mxu0 %v40
  %1258 = vmatpush.msra.mxu0 %v36
  %1259 = vmatpush.msra.mxu0 %v32
  %1260 = vmatpush.msra.mxu0 %v28
  %1261 = vmatpush.msra.mxu0 %v24
  %1262 = vmatmul.f32.gmra.mxu0 %v1070
  %v1263 = vpop.f32.mrf.mxu0
  %v1264 = vadd.f32 0.0, %v1263
  %1265 = vdwg.mxu0
  %v1266 = vadd.f32 %v1178, %v1204
  %v1267 = vadd.f32 %v1179, %v1224
  %v1268 = vadd.f32 %v1180, %v1244
  %v1269 = vadd.f32 %v1181, %v1264
  %v1270 = vmul.f32 %v1266, 0.5
  %v1271 = vtanh.pop %v1270
  %v1272 = vmul.f32 %v1271, 0.5
  %v1273 = vadd.f32 %v1272, 0.5
  %v1274 = vmul.f32 %v1267, 0.5
  %v1275 = vtanh.pop %v1274
  %v1276 = vmul.f32 %v1275, 0.5
  %v1277 = vadd.f32 %v1276, 0.5
  %v1278 = vtanh.pop %v1268
  %v1279 = vmul.f32 %v1269, 0.5
  %v1280 = vtanh.pop %v1279
  %v1281 = vmul.f32 %v1280, 0.5
  %v1282 = vadd.f32 %v1281, 0.5
  %v1283 = vmul.f32 %v1277, %v1068
  %v1284 = vmul.f32 %v1273, %v1278
  %v1285 = vadd.f32 %v1283, %v1284
  %v1286 = vtanh.pop %v1285
  %v1287 = vmul.f32 %v1282, %v1286
  %1288 = vmatpush.msra.mxu0 %v81
  %1289 = vmatpush.msra.mxu0 %v77
  %1290 = vmatpush.msra.mxu0 %v73
  %1291 = vmatpush.msra.mxu0 %v69
  %1292 = vmatpush.msra.mxu0 %v65
  %1293 = vmatpush.msra.mxu0 %v61
  %1294 = vmatpush.msra.mxu0 %v57
  %1295 = vmatpush.msra.mxu0 %v53
  %1296 = vmatpush.msra.mxu0 %v49
  %1297 = vmatpush.msra.mxu0 %v45
  %1298 = vmatpush.msra.mxu0 %v41
  %1299 = vmatpush.msra.mxu0 %v37
  %1300 = vmatpush.msra.mxu0 %v33
  %1301 = vmatpush.msra.mxu0 %v29
  %1302 = vmatpush.msra.mxu0 %v25
  %1303 = vmatpush.msra.mxu0 %v21
  %1304 = vmatmul.f32.gmra.mxu0 %v1172
  %v1305 = vpop.f32.mrf.mxu0
  %v1306 = vadd.f32 0.0, %v1305
  %1307 = vdwg.mxu0
  %1308 = vmatpush.msra.mxu0 %v82
  %1309 = vmatpush.msra.mxu0 %v78
  %1310 = vmatpush.msra.mxu0 %v74
  %1311 = vmatpush.msra.mxu0 %v70
  %1312 = vmatpush.msra.mxu0 %v66
  %1313 = vmatpush.msra.mxu0 %v62
  %1314 = vmatpush.msra.mxu0 %v58
  %1315 = vmatpush.msra.mxu0 %v54
  %1316 = vmatpush.msra.mxu0 %v50
  %1317 = vmatpush.msra.mxu0 %v46
  %1318 = vmatpush.msra.mxu0 %v42
  %1319 = vmatpush.msra.mxu0 %v38
  %1320 = vmatpush.msra.mxu0 %v34
  %1321 = vmatpush.msra.mxu0 %v30
  %1322 = vmatpush.msra.mxu0 %v26
  %1323 = vmatpush.msra.mxu0 %v22
  %1324 = vmatmul.f32.gmra.mxu0 %v1172
  %v1325 = vpop.f32.mrf.mxu0
  %v1326 = vadd.f32 0.0, %v1325
  %1327 = vdwg.mxu0
  %1328 = vmatpush.msra.mxu0 %v83
  %1329 = vmatpush.msra.mxu0 %v79
  %1330 = vmatpush.msra.mxu0 %v75
  %1331 = vmatpush.msra.mxu0 %v71
  %1332 = vmatpush.msra.mxu0 %v67
  %1333 = vmatpush.msra.mxu0 %v63
  %1334 = vmatpush.msra.mxu0 %v59
  %1335 = vmatpush.msra.mxu0 %v55
  %1336 = vmatpush.msra.mxu0 %v51
  %1337 = vmatpush.msra.mxu0 %v47
  %1338 = vmatpush.msra.mxu0 %v43
  %1339 = vmatpush.msra.mxu0 %v39
  %1340 = vmatpush.msra.mxu0 %v35
  %1341 = vmatpush.msra.mxu0 %v31
  %1342 = vmatpush.msra.mxu0 %v27
  %1343 = vmatpush.msra.mxu0 %v23
  %1344 = vmatmul.f32.gmra.mxu0 %v1172
  %v1345 = vpop.f32.mrf.mxu0
  %v1346 = vadd.f32 0.0, %v1345
  %1347 = vdwg.mxu0
  %1348 = vmatpush.msra.mxu0 %v84
  %1349 = vmatpush.msra.mxu0 %v80
  %1350 = vmatpush.msra.mxu0 %v76
  %1351 = vmatpush.msra.mxu0 %v72
  %1352 = vmatpush.msra.mxu0 %v68
  %1353 = vmatpush.msra.mxu0 %v64
  %1354 = vmatpush.msra.mxu0 %v60
  %1355 = vmatpush.msra.mxu0 %v56
  %1356 = vmatpush.msra.mxu0 %v52
  %1357 = vmatpush.msra.mxu0 %v48
  %1358 = vmatpush.msra.mxu0 %v44
  %1359 = vmatpush.msra.mxu0 %v40
  %1360 = vmatpush.msra.mxu0 %v36
  %1361 = vmatpush.msra.mxu0 %v32
  %1362 = vmatpush.msra.mxu0 %v28
  %1363 = vmatpush.msra.mxu0 %v24
  %1364 = vmatmul.f32.gmra.mxu0 %v1172
  %v1365 = vpop.f32.mrf.mxu0
  %v1366 = vadd.f32 0.0, %v1365
  %1367 = vdwg.mxu0
  %v1368 = vadd.f32 %v1182, %v1306
  %v1369 = vadd.f32 %v1183, %v1326
  %v1370 = vadd.f32 %v1184, %v1346
  %v1371 = vadd.f32 %v1185, %v1366
  %v1372 = vmul.f32 %v1368, 0.5
  %v1373 = vtanh.pop %v1372
  %v1374 = vmul.f32 %v1373, 0.5
  %v1375 = vadd.f32 %v1374, 0.5
  %v1376 = vmul.f32 %v1369, 0.5
  %v1377 = vtanh.pop %v1376
  %v1378 = vmul.f32 %v1377, 0.5
  %v1379 = vadd.f32 %v1378, 0.5
  %v1380 = vtanh.pop %v1370
  %v1381 = vmul.f32 %v1371, 0.5
  %v1382 = vtanh.pop %v1381
  %v1383 = vmul.f32 %v1382, 0.5
  %v1384 = vadd.f32 %v1383, 0.5
  %v1385 = vmul.f32 %v1379, %v1170
  %v1386 = vmul.f32 %v1375, %v1380
  %v1387 = vadd.f32 %v1385, %v1386
  %v1388 = vtanh.pop %v1387
  %v1389 = vmul.f32 %v1384, %v1388
  %s1390 = scalar_lea.vmem %s0, 192
  %v1391 = vld [vmem:[%s1390] sm:$0xff]
  %v1392 = vld [vmem:[%s1390 + $0x8] sm:$0xff]
  %v1393 = vld [vmem:[%s1390 + $0x10] sm:$0xff]
  %v1394 = vld [vmem:[%s1390 + $0x18] sm:$0xff]
  %v1395 = vunpack.c.l.bf16 %v1391
  %v1396 = vunpack.c.h.bf16 %v1391
  %v1397 = vunpack.c.l.bf16 %v1392
  %v1398 = vunpack.c.h.bf16 %v1392
  %v1399 = vunpack.c.l.bf16 %v1393
  %v1400 = vunpack.c.h.bf16 %v1393
  %v1401 = vunpack.c.l.bf16 %v1394
  %v1402 = vunpack.c.h.bf16 %v1394
  %1403 = vmatpush.msra.mxu0 %v81
  %1404 = vmatpush.msra.mxu0 %v77
  %1405 = vmatpush.msra.mxu0 %v73
  %1406 = vmatpush.msra.mxu0 %v69
  %1407 = vmatpush.msra.mxu0 %v65
  %1408 = vmatpush.msra.mxu0 %v61
  %1409 = vmatpush.msra.mxu0 %v57
  %1410 = vmatpush.msra.mxu0 %v53
  %1411 = vmatpush.msra.mxu0 %v49
  %1412 = vmatpush.msra.mxu0 %v45
  %1413 = vmatpush.msra.mxu0 %v41
  %1414 = vmatpush.msra.mxu0 %v37
  %1415 = vmatpush.msra.mxu0 %v33
  %1416 = vmatpush.msra.mxu0 %v29
  %1417 = vmatpush.msra.mxu0 %v25
  %1418 = vmatpush.msra.mxu0 %v21
  %1419 = vmatmul.f32.gmra.mxu0 %v1287
  %v1420 = vpop.f32.mrf.mxu0
  %v1421 = vadd.f32 0.0, %v1420
  %1422 = vdwg.mxu0
  %1423 = vmatpush.msra.mxu0 %v82
  %1424 = vmatpush.msra.mxu0 %v78
  %1425 = vmatpush.msra.mxu0 %v74
  %1426 = vmatpush.msra.mxu0 %v70
  %1427 = vmatpush.msra.mxu0 %v66
  %1428 = vmatpush.msra.mxu0 %v62
  %1429 = vmatpush.msra.mxu0 %v58
  %1430 = vmatpush.msra.mxu0 %v54
  %1431 = vmatpush.msra.mxu0 %v50
  %1432 = vmatpush.msra.mxu0 %v46
  %1433 = vmatpush.msra.mxu0 %v42
  %1434 = vmatpush.msra.mxu0 %v38
  %1435 = vmatpush.msra.mxu0 %v34
  %1436 = vmatpush.msra.mxu0 %v30
  %1437 = vmatpush.msra.mxu0 %v26
  %1438 = vmatpush.msra.mxu0 %v22
  %1439 = vmatmul.f32.gmra.mxu0 %v1287
  %v1440 = vpop.f32.mrf.mxu0
  %v1441 = vadd.f32 0.0, %v1440
  %1442 = vdwg.mxu0
  %1443 = vmatpush.msra.mxu0 %v83
  %1444 = vmatpush.msra.mxu0 %v79
  %1445 = vmatpush.msra.mxu0 %v75
  %1446 = vmatpush.msra.mxu0 %v71
  %1447 = vmatpush.msra.mxu0 %v67
  %1448 = vmatpush.msra.mxu0 %v63
  %1449 = vmatpush.msra.mxu0 %v59
  %1450 = vmatpush.msra.mxu0 %v55
  %1451 = vmatpush.msra.mxu0 %v51
  %1452 = vmatpush.msra.mxu0 %v47
  %1453 = vmatpush.msra.mxu0 %v43
  %1454 = vmatpush.msra.mxu0 %v39
  %1455 = vmatpush.msra.mxu0 %v35
  %1456 = vmatpush.msra.mxu0 %v31
  %1457 = vmatpush.msra.mxu0 %v27
  %1458 = vmatpush.msra.mxu0 %v23
  %1459 = vmatmul.f32.gmra.mxu0 %v1287
  %v1460 = vpop.f32.mrf.mxu0
  %v1461 = vadd.f32 0.0, %v1460
  %1462 = vdwg.mxu0
  %1463 = vmatpush.msra.mxu0 %v84
  %1464 = vmatpush.msra.mxu0 %v80
  %1465 = vmatpush.msra.mxu0 %v76
  %1466 = vmatpush.msra.mxu0 %v72
  %1467 = vmatpush.msra.mxu0 %v68
  %1468 = vmatpush.msra.mxu0 %v64
  %1469 = vmatpush.msra.mxu0 %v60
  %1470 = vmatpush.msra.mxu0 %v56
  %1471 = vmatpush.msra.mxu0 %v52
  %1472 = vmatpush.msra.mxu0 %v48
  %1473 = vmatpush.msra.mxu0 %v44
  %1474 = vmatpush.msra.mxu0 %v40
  %1475 = vmatpush.msra.mxu0 %v36
  %1476 = vmatpush.msra.mxu0 %v32
  %1477 = vmatpush.msra.mxu0 %v28
  %1478 = vmatpush.msra.mxu0 %v24
  %1479 = vmatmul.f32.gmra.mxu0 %v1287
  %v1480 = vpop.f32.mrf.mxu0
  %v1481 = vadd.f32 0.0, %v1480
  %1482 = vdwg.mxu0
  %v1483 = vadd.f32 %v1395, %v1421
  %v1484 = vadd.f32 %v1396, %v1441
  %v1485 = vadd.f32 %v1397, %v1461
  %v1486 = vadd.f32 %v1398, %v1481
  %v1487 = vmul.f32 %v1483, 0.5
  %v1488 = vtanh.pop %v1487
  %v1489 = vmul.f32 %v1488, 0.5
  %v1490 = vadd.f32 %v1489, 0.5
  %v1491 = vmul.f32 %v1484, 0.5
  %v1492 = vtanh.pop %v1491
  %v1493 = vmul.f32 %v1492, 0.5
  %v1494 = vadd.f32 %v1493, 0.5
  %v1495 = vtanh.pop %v1485
  %v1496 = vmul.f32 %v1486, 0.5
  %v1497 = vtanh.pop %v1496
  %v1498 = vmul.f32 %v1497, 0.5
  %v1499 = vadd.f32 %v1498, 0.5
  %v1500 = vmul.f32 %v1494, %v1285
  %v1501 = vmul.f32 %v1490, %v1495
  %v1502 = vadd.f32 %v1500, %v1501
  %v1503 = vtanh.pop %v1502
  %v1504 = vmul.f32 %v1499, %v1503
  %1505 = vmatpush.msra.mxu0 %v81
  %1506 = vmatpush.msra.mxu0 %v77
  %1507 = vmatpush.msra.mxu0 %v73
  %1508 = vmatpush.msra.mxu0 %v69
  %1509 = vmatpush.msra.mxu0 %v65
  %1510 = vmatpush.msra.mxu0 %v61
  %1511 = vmatpush.msra.mxu0 %v57
  %1512 = vmatpush.msra.mxu0 %v53
  %1513 = vmatpush.msra.mxu0 %v49
  %1514 = vmatpush.msra.mxu0 %v45
  %1515 = vmatpush.msra.mxu0 %v41
  %1516 = vmatpush.msra.mxu0 %v37
  %1517 = vmatpush.msra.mxu0 %v33
  %1518 = vmatpush.msra.mxu0 %v29
  %1519 = vmatpush.msra.mxu0 %v25
  %1520 = vmatpush.msra.mxu0 %v21
  %1521 = vmatmul.f32.gmra.mxu0 %v1389
  %v1522 = vpop.f32.mrf.mxu0
  %v1523 = vadd.f32 0.0, %v1522
  %1524 = vdwg.mxu0
  %1525 = vmatpush.msra.mxu0 %v82
  %1526 = vmatpush.msra.mxu0 %v78
  %1527 = vmatpush.msra.mxu0 %v74
  %1528 = vmatpush.msra.mxu0 %v70
  %1529 = vmatpush.msra.mxu0 %v66
  %1530 = vmatpush.msra.mxu0 %v62
  %1531 = vmatpush.msra.mxu0 %v58
  %1532 = vmatpush.msra.mxu0 %v54
  %1533 = vmatpush.msra.mxu0 %v50
  %1534 = vmatpush.msra.mxu0 %v46
  %1535 = vmatpush.msra.mxu0 %v42
  %1536 = vmatpush.msra.mxu0 %v38
  %1537 = vmatpush.msra.mxu0 %v34
  %1538 = vmatpush.msra.mxu0 %v30
  %1539 = vmatpush.msra.mxu0 %v26
  %1540 = vmatpush.msra.mxu0 %v22
  %1541 = vmatmul.f32.gmra.mxu0 %v1389
  %v1542 = vpop.f32.mrf.mxu0
  %v1543 = vadd.f32 0.0, %v1542
  %1544 = vdwg.mxu0
  %1545 = vmatpush.msra.mxu0 %v83
  %1546 = vmatpush.msra.mxu0 %v79
  %1547 = vmatpush.msra.mxu0 %v75
  %1548 = vmatpush.msra.mxu0 %v71
  %1549 = vmatpush.msra.mxu0 %v67
  %1550 = vmatpush.msra.mxu0 %v63
  %1551 = vmatpush.msra.mxu0 %v59
  %1552 = vmatpush.msra.mxu0 %v55
  %1553 = vmatpush.msra.mxu0 %v51
  %1554 = vmatpush.msra.mxu0 %v47
  %1555 = vmatpush.msra.mxu0 %v43
  %1556 = vmatpush.msra.mxu0 %v39
  %1557 = vmatpush.msra.mxu0 %v35
  %1558 = vmatpush.msra.mxu0 %v31
  %1559 = vmatpush.msra.mxu0 %v27
  %1560 = vmatpush.msra.mxu0 %v23
  %1561 = vmatmul.f32.gmra.mxu0 %v1389
  %v1562 = vpop.f32.mrf.mxu0
  %v1563 = vadd.f32 0.0, %v1562
  %1564 = vdwg.mxu0
  %1565 = vmatpush.msra.mxu0 %v84
  %1566 = vmatpush.msra.mxu0 %v80
  %1567 = vmatpush.msra.mxu0 %v76
  %1568 = vmatpush.msra.mxu0 %v72
  %1569 = vmatpush.msra.mxu0 %v68
  %1570 = vmatpush.msra.mxu0 %v64
  %1571 = vmatpush.msra.mxu0 %v60
  %1572 = vmatpush.msra.mxu0 %v56
  %1573 = vmatpush.msra.mxu0 %v52
  %1574 = vmatpush.msra.mxu0 %v48
  %1575 = vmatpush.msra.mxu0 %v44
  %1576 = vmatpush.msra.mxu0 %v40
  %1577 = vmatpush.msra.mxu0 %v36
  %1578 = vmatpush.msra.mxu0 %v32
  %1579 = vmatpush.msra.mxu0 %v28
  %1580 = vmatpush.msra.mxu0 %v24
  %1581 = vmatmul.f32.gmra.mxu0 %v1389
  %v1582 = vpop.f32.mrf.mxu0
  %v1583 = vadd.f32 0.0, %v1582
  %1584 = vdwg.mxu0
  %v1585 = vadd.f32 %v1399, %v1523
  %v1586 = vadd.f32 %v1400, %v1543
  %v1587 = vadd.f32 %v1401, %v1563
  %v1588 = vadd.f32 %v1402, %v1583
  %v1589 = vmul.f32 %v1585, 0.5
  %v1590 = vtanh.pop %v1589
  %v1591 = vmul.f32 %v1590, 0.5
  %v1592 = vadd.f32 %v1591, 0.5
  %v1593 = vmul.f32 %v1586, 0.5
  %v1594 = vtanh.pop %v1593
  %v1595 = vmul.f32 %v1594, 0.5
  %v1596 = vadd.f32 %v1595, 0.5
  %v1597 = vtanh.pop %v1587
  %v1598 = vmul.f32 %v1588, 0.5
  %v1599 = vtanh.pop %v1598
  %v1600 = vmul.f32 %v1599, 0.5
  %v1601 = vadd.f32 %v1600, 0.5
  %v1602 = vmul.f32 %v1596, %v1387
  %v1603 = vmul.f32 %v1592, %v1597
  %v1604 = vadd.f32 %v1602, %v1603
  %v1605 = vtanh.pop %v1604
  %v1606 = vmul.f32 %v1601, %v1605
  %s1607 = scalar_lea.vmem %s0, 224
  %v1608 = vld [vmem:[%s1607] sm:$0xff]
  %v1609 = vld [vmem:[%s1607 + $0x8] sm:$0xff]
  %v1610 = vld [vmem:[%s1607 + $0x10] sm:$0xff]
  %v1611 = vld [vmem:[%s1607 + $0x18] sm:$0xff]
  %v1612 = vunpack.c.l.bf16 %v1608
  %v1613 = vunpack.c.h.bf16 %v1608
  %v1614 = vunpack.c.l.bf16 %v1609
  %v1615 = vunpack.c.h.bf16 %v1609
  %v1616 = vunpack.c.l.bf16 %v1610
  %v1617 = vunpack.c.h.bf16 %v1610
  %v1618 = vunpack.c.l.bf16 %v1611
  %v1619 = vunpack.c.h.bf16 %v1611
  %1620 = vmatpush.msra.mxu0 %v81
  %1621 = vmatpush.msra.mxu0 %v77
  %1622 = vmatpush.msra.mxu0 %v73
  %1623 = vmatpush.msra.mxu0 %v69
  %1624 = vmatpush.msra.mxu0 %v65
  %1625 = vmatpush.msra.mxu0 %v61
  %1626 = vmatpush.msra.mxu0 %v57
  %1627 = vmatpush.msra.mxu0 %v53
  %1628 = vmatpush.msra.mxu0 %v49
  %1629 = vmatpush.msra.mxu0 %v45
  %1630 = vmatpush.msra.mxu0 %v41
  %1631 = vmatpush.msra.mxu0 %v37
  %1632 = vmatpush.msra.mxu0 %v33
  %1633 = vmatpush.msra.mxu0 %v29
  %1634 = vmatpush.msra.mxu0 %v25
  %1635 = vmatpush.msra.mxu0 %v21
  %1636 = vmatmul.f32.gmra.mxu0 %v1504
  %v1637 = vpop.f32.mrf.mxu0
  %v1638 = vadd.f32 0.0, %v1637
  %1639 = vdwg.mxu0
  %1640 = vmatpush.msra.mxu0 %v82
  %1641 = vmatpush.msra.mxu0 %v78
  %1642 = vmatpush.msra.mxu0 %v74
  %1643 = vmatpush.msra.mxu0 %v70
  %1644 = vmatpush.msra.mxu0 %v66
  %1645 = vmatpush.msra.mxu0 %v62
  %1646 = vmatpush.msra.mxu0 %v58
  %1647 = vmatpush.msra.mxu0 %v54
  %1648 = vmatpush.msra.mxu0 %v50
  %1649 = vmatpush.msra.mxu0 %v46
  %1650 = vmatpush.msra.mxu0 %v42
  %1651 = vmatpush.msra.mxu0 %v38
  %1652 = vmatpush.msra.mxu0 %v34
  %1653 = vmatpush.msra.mxu0 %v30
  %1654 = vmatpush.msra.mxu0 %v26
  %1655 = vmatpush.msra.mxu0 %v22
  %1656 = vmatmul.f32.gmra.mxu0 %v1504
  %v1657 = vpop.f32.mrf.mxu0
  %v1658 = vadd.f32 0.0, %v1657
  %1659 = vdwg.mxu0
  %1660 = vmatpush.msra.mxu0 %v83
  %1661 = vmatpush.msra.mxu0 %v79
  %1662 = vmatpush.msra.mxu0 %v75
  %1663 = vmatpush.msra.mxu0 %v71
  %1664 = vmatpush.msra.mxu0 %v67
  %1665 = vmatpush.msra.mxu0 %v63
  %1666 = vmatpush.msra.mxu0 %v59
  %1667 = vmatpush.msra.mxu0 %v55
  %1668 = vmatpush.msra.mxu0 %v51
  %1669 = vmatpush.msra.mxu0 %v47
  %1670 = vmatpush.msra.mxu0 %v43
  %1671 = vmatpush.msra.mxu0 %v39
  %1672 = vmatpush.msra.mxu0 %v35
  %1673 = vmatpush.msra.mxu0 %v31
  %1674 = vmatpush.msra.mxu0 %v27
  %1675 = vmatpush.msra.mxu0 %v23
  %1676 = vmatmul.f32.gmra.mxu0 %v1504
  %v1677 = vpop.f32.mrf.mxu0
  %v1678 = vadd.f32 0.0, %v1677
  %1679 = vdwg.mxu0
  %1680 = vmatpush.msra.mxu0 %v84
  %1681 = vmatpush.msra.mxu0 %v80
  %1682 = vmatpush.msra.mxu0 %v76
  %1683 = vmatpush.msra.mxu0 %v72
  %1684 = vmatpush.msra.mxu0 %v68
  %1685 = vmatpush.msra.mxu0 %v64
  %1686 = vmatpush.msra.mxu0 %v60
  %1687 = vmatpush.msra.mxu0 %v56
  %1688 = vmatpush.msra.mxu0 %v52
  %1689 = vmatpush.msra.mxu0 %v48
  %1690 = vmatpush.msra.mxu0 %v44
  %1691 = vmatpush.msra.mxu0 %v40
  %1692 = vmatpush.msra.mxu0 %v36
  %1693 = vmatpush.msra.mxu0 %v32
  %1694 = vmatpush.msra.mxu0 %v28
  %1695 = vmatpush.msra.mxu0 %v24
  %1696 = vmatmul.f32.gmra.mxu0 %v1504
  %v1697 = vpop.f32.mrf.mxu0
  %v1698 = vadd.f32 0.0, %v1697
  %1699 = vdwg.mxu0
  %v1700 = vadd.f32 %v1612, %v1638
  %v1701 = vadd.f32 %v1613, %v1658
  %v1702 = vadd.f32 %v1614, %v1678
  %v1703 = vadd.f32 %v1615, %v1698
  %v1704 = vmul.f32 %v1700, 0.5
  %v1705 = vtanh.pop %v1704
  %v1706 = vmul.f32 %v1705, 0.5
  %v1707 = vadd.f32 %v1706, 0.5
  %v1708 = vmul.f32 %v1701, 0.5
  %v1709 = vtanh.pop %v1708
  %v1710 = vmul.f32 %v1709, 0.5
  %v1711 = vadd.f32 %v1710, 0.5
  %v1712 = vtanh.pop %v1702
  %v1713 = vmul.f32 %v1703, 0.5
  %v1714 = vtanh.pop %v1713
  %v1715 = vmul.f32 %v1714, 0.5
  %v1716 = vadd.f32 %v1715, 0.5
  %v1717 = vmul.f32 %v1711, %v1502
  %v1718 = vmul.f32 %v1707, %v1712
  %v1719 = vadd.f32 %v1717, %v1718
  %v1720 = vtanh.pop %v1719
  %v1721 = vmul.f32 %v1716, %v1720
  %1722 = vmatpush.msra.mxu0 %v81
  %1723 = vmatpush.msra.mxu0 %v77
  %1724 = vmatpush.msra.mxu0 %v73
  %1725 = vmatpush.msra.mxu0 %v69
  %1726 = vmatpush.msra.mxu0 %v65
  %1727 = vmatpush.msra.mxu0 %v61
  %1728 = vmatpush.msra.mxu0 %v57
  %1729 = vmatpush.msra.mxu0 %v53
  %1730 = vmatpush.msra.mxu0 %v49
  %1731 = vmatpush.msra.mxu0 %v45
  %1732 = vmatpush.msra.mxu0 %v41
  %1733 = vmatpush.msra.mxu0 %v37
  %1734 = vmatpush.msra.mxu0 %v33
  %1735 = vmatpush.msra.mxu0 %v29
  %1736 = vmatpush.msra.mxu0 %v25
  %1737 = vmatpush.msra.mxu0 %v21
  %1738 = vmatmul.f32.gmra.mxu0 %v1606
  %v1739 = vpop.f32.mrf.mxu0
  %v1740 = vadd.f32 0.0, %v1739
  %1741 = vdwg.mxu0
  %1742 = vmatpush.msra.mxu0 %v82
  %1743 = vmatpush.msra.mxu0 %v78
  %1744 = vmatpush.msra.mxu0 %v74
  %1745 = vmatpush.msra.mxu0 %v70
  %1746 = vmatpush.msra.mxu0 %v66
  %1747 = vmatpush.msra.mxu0 %v62
  %1748 = vmatpush.msra.mxu0 %v58
  %1749 = vmatpush.msra.mxu0 %v54
  %1750 = vmatpush.msra.mxu0 %v50
  %1751 = vmatpush.msra.mxu0 %v46
  %1752 = vmatpush.msra.mxu0 %v42
  %1753 = vmatpush.msra.mxu0 %v38
  %1754 = vmatpush.msra.mxu0 %v34
  %1755 = vmatpush.msra.mxu0 %v30
  %1756 = vmatpush.msra.mxu0 %v26
  %1757 = vmatpush.msra.mxu0 %v22
  %1758 = vmatmul.f32.gmra.mxu0 %v1606
  %v1759 = vpop.f32.mrf.mxu0
  %v1760 = vadd.f32 0.0, %v1759
  %1761 = vdwg.mxu0
  %1762 = vmatpush.msra.mxu0 %v83
  %1763 = vmatpush.msra.mxu0 %v79
  %1764 = vmatpush.msra.mxu0 %v75
  %1765 = vmatpush.msra.mxu0 %v71
  %1766 = vmatpush.msra.mxu0 %v67
  %1767 = vmatpush.msra.mxu0 %v63
  %1768 = vmatpush.msra.mxu0 %v59
  %1769 = vmatpush.msra.mxu0 %v55
  %1770 = vmatpush.msra.mxu0 %v51
  %1771 = vmatpush.msra.mxu0 %v47
  %1772 = vmatpush.msra.mxu0 %v43
  %1773 = vmatpush.msra.mxu0 %v39
  %1774 = vmatpush.msra.mxu0 %v35
  %1775 = vmatpush.msra.mxu0 %v31
  %1776 = vmatpush.msra.mxu0 %v27
  %1777 = vmatpush.msra.mxu0 %v23
  %1778 = vmatmul.f32.gmra.mxu0 %v1606
  %v1779 = vpop.f32.mrf.mxu0
  %v1780 = vadd.f32 0.0, %v1779
  %1781 = vdwg.mxu0
  %1782 = vmatpush.msra.mxu0 %v84
  %1783 = vmatpush.msra.mxu0 %v80
  %1784 = vmatpush.msra.mxu0 %v76
  %1785 = vmatpush.msra.mxu0 %v72
  %1786 = vmatpush.msra.mxu0 %v68
  %1787 = vmatpush.msra.mxu0 %v64
  %1788 = vmatpush.msra.mxu0 %v60
  %1789 = vmatpush.msra.mxu0 %v56
  %1790 = vmatpush.msra.mxu0 %v52
  %1791 = vmatpush.msra.mxu0 %v48
  %1792 = vmatpush.msra.mxu0 %v44
  %1793 = vmatpush.msra.mxu0 %v40
  %1794 = vmatpush.msra.mxu0 %v36
  %1795 = vmatpush.msra.mxu0 %v32
  %1796 = vmatpush.msra.mxu0 %v28
  %1797 = vmatpush.msra.mxu0 %v24
  %1798 = vmatmul.f32.gmra.mxu0 %v1606
  %v1799 = vpop.f32.mrf.mxu0
  %v1800 = vadd.f32 0.0, %v1799
  %1801 = vdwg.mxu0
  %v1802 = vadd.f32 %v1616, %v1740
  %v1803 = vadd.f32 %v1617, %v1760
  %v1804 = vadd.f32 %v1618, %v1780
  %v1805 = vadd.f32 %v1619, %v1800
  %v1806 = vmul.f32 %v1802, 0.5
  %v1807 = vtanh.pop %v1806
  %v1808 = vmul.f32 %v1807, 0.5
  %v1809 = vadd.f32 %v1808, 0.5
  %v1810 = vmul.f32 %v1803, 0.5
  %v1811 = vtanh.pop %v1810
  %v1812 = vmul.f32 %v1811, 0.5
  %v1813 = vadd.f32 %v1812, 0.5
  %v1814 = vtanh.pop %v1804
  %v1815 = vmul.f32 %v1805, 0.5
  %v1816 = vtanh.pop %v1815
  %v1817 = vmul.f32 %v1816, 0.5
  %v1818 = vadd.f32 %v1817, 0.5
  %v1819 = vmul.f32 %v1813, %v1604
  %v1820 = vmul.f32 %v1809, %v1814
  %v1821 = vadd.f32 %v1819, %v1820
  %v1822 = vtanh.pop %v1821
  %v1823 = vmul.f32 %v1818, %v1822
  %1824 = vst [vmem:[%s2] sm:$0xff] %v1721
  %1825 = vst [vmem:[%s3] sm:$0xff] %v1719
  %1826 = vst [vmem:[%s2 + $0x8] sm:$0xff] %v1823
  %1827 = vst [vmem:[%s3 + $0x8] sm:$0xff] %v1821
  // Predicated region
  $region14: #{lstm_forward.1} parent=0 // pred_check
    _
  $region15: #{lstm_forward.1} parent=0 // pred_check_branch
    %1829 = sbr.rel (0) target = $region17
  $region16: #{lstm_forward.1} parent=0 // pred_region
    _
  $region17: #{lstm_forward.1} parent=0 // pred_fallthru
    _
  // Predicated region
  $region18: #{lstm_forward.1} parent=0 // pred_check
    _
  $region19: #{lstm_forward.1} parent=0 // pred_check_branch
    %1831 = sbr.rel (0) target = $region21
  $region20: #{lstm_forward.1} parent=0 // pred_region
    _
  $region21: #{lstm_forward.1} parent=0 // pred_fallthru
    _
  // Predicated region
  $region22: #{lstm_forward.1} parent=0 // pred_check
    _
  $region23: #{lstm_forward.1} parent=0 // pred_check_branch
    %1833 = sbr.rel (0) target = $region25
  $region24: #{lstm_forward.1} parent=0 // pred_region
    _
  $region25: #{lstm_forward.1} parent=0 // pred_fallthru
    _
  // Predicated region
  $region26: #{lstm_forward.1} parent=0 // pred_check
    _
  $region27: #{lstm_forward.1} parent=0 // pred_check_branch
    %1835 = sbr.rel (0) target = $region29
  $region28: #{lstm_forward.1} parent=0 // pred_region
    _
  $region29: #{lstm_forward.1} parent=0 // pred_fallthru
    _

</llo_original>
